<compile_context>
chip_gen: v7x
topology: tpu7x:2x2x1
jax: 0.10.0
libtpu: 0.0.40
codegen_flags: <defaults>
</compile_context>

<pallas_src>
import jax
import jax.numpy as jnp
import numpy as np
from jax import lax
from jax.experimental import pallas as pl
from jax.experimental.pallas import tpu as pltpu


# ----------------------------- helpers --------------------------------------

def _round_up(a, b):
    return (a + b - 1) // b * b


def _itemsize(dt):
    return np.dtype(dt).itemsize


def _vmem_budget():
    """Usable VMEM budget (bytes) used for tile sizing and vmem_limit_bytes."""
    try:
        cap = pltpu.get_tpu_info().vmem_capacity_bytes
    except Exception:
        cap = 64 * 1024 * 1024          # conservative default (v7x physical VMEM)
    return int(cap * 0.7)


_FUSED_CONV_DISABLED = False            # flipped if the fused path fails to lower


# ------------------------- fused conv kernel ---------------------------------

def _fused_conv_kernel(ph_ref, w_ref, b_ref, o_ref):
    """One whole image (all 4 stride-2 phases resident in VMEM), one OC tile.

    ph_ref: (1, 2, 2, OH+1, OWpad+1, C)   ph[0,a,b,i,j,:] == xpad[2i+a, 2j+b, :]
    w_ref : (9, C, TN)                    tap-major weights (kh*3+kw)
    b_ref : (1, TN)                       f32 bias
    o_ref : (OH*OWpad, TN)
    """
    _, _, _, ohp, owp, c = ph_ref.shape
    oh, owpad = ohp - 1, owp - 1
    acc = jnp.zeros(o_ref.shape, jnp.float32)
    for kh in range(3):
        for kw in range(3):
            # window for tap (kh, kw): xpad[kh + 2*i, kw + 2*j, :]
            win = ph_ref[0, kh % 2, kw % 2,
                         kh // 2: kh // 2 + oh,
                         kw // 2: kw // 2 + owpad, :]          # (OH, OWpad, C)
            win2 = win.reshape(oh * owpad, c)                  # OWpad % 8 == 0 -> layout-preserving
            acc += jnp.dot(win2, w_ref[3 * kh + kw],
                           preferred_element_type=jnp.float32)
    o_ref[...] = (acc + b_ref[...]).astype(o_ref.dtype)


def _conv_fused(x, weight, bias, padding, cdt, budget):
    N, C, H, W = x.shape
    OC = weight.shape[0]
    K, S = 3, 2
    OH = (H + 2 * padding - K) // S + 1
    OW = (W + 2 * padding - K) // S + 1
    OWpad = _round_up(OW, 8)            # extra output cols are garbage, sliced off
    OHp, OWp = OH + 1, OWpad + 1
    OC_p = _round_up(OC, 128)
    TN = 256 if OC_p % 256 == 0 else 128
    M_img = OH * OWpad

    # --- glue: one transpose + pad + phase split (~1x activation in HBM) -----
    xh = jnp.transpose(x, (0, 2, 3, 1)).astype(cdt)            # NHWC, bf16
    pad_b = 2 * OHp - padding - H
    pad_r = 2 * OWp - padding - W
    assert pad_b >= 0 and pad_r >= 0
    xp = jnp.pad(xh, ((0, 0), (padding, pad_b), (padding, pad_r), (0, 0)))
    # ph[n, a, b, i, j, c] = xp[n, 2i+a, 2j+b, c]
    ph = xp.reshape(N, OHp, 2, OWp, 2, C).transpose(0, 2, 4, 1, 3, 5)

    # weights: OIHW -> (KH, KW, C, OC) -> (9, C, OC_p), tap-major / channel rows
    w3 = jnp.transpose(weight, (2, 3, 1, 0)).reshape(9, C, OC).astype(cdt)
    b2 = bias.reshape(1, OC).astype(jnp.float32)
    if OC_p != OC:
        w3 = jnp.pad(w3, ((0, 0), (0, 0), (0, OC_p - OC)))
        b2 = jnp.pad(b2, ((0, 0), (0, OC_p - OC)))

    out2 = pl.pallas_call(
        _fused_conv_kernel,
        out_shape=jax.ShapeDtypeStruct((N * M_img, OC_p), x.dtype),
        grid=(N, OC_p // TN),
        in_specs=[
            pl.BlockSpec((1, 2, 2, OHp, OWp, C),
                         lambda n, j: (n, 0, 0, 0, 0, 0)),      # image resident per n
            pl.BlockSpec((9, C, TN), lambda n, j: (0, 0, j)),   # tap-sliced weights
            pl.BlockSpec((1, TN), lambda n, j: (0, j)),
        ],
        out_specs=pl.BlockSpec((M_img, TN), lambda n, j: (n, j)),
        compiler_params=pltpu.CompilerParams(
            dimension_semantics=("parallel", "parallel"),
            vmem_limit_bytes=budget),
    )(ph, w3, b2)

    # TODO(synk): keep NHWC for a fused consumer to avoid this output transpose.
    out = out2.reshape(N, OH, OWpad, OC_p)[:, :, :OW, :OC]
    return jnp.transpose(out, (0, 3, 1, 2))


# ----------------------- im2col fallback (large activations) -----------------

def _conv_matmul_kernel(p_ref, w_ref, b_ref, o_ref, acc_ref):
    """One (TM, TN) output tile; K-reduction over grid axis 2."""
    k = pl.program_id(2)

    @pl.when(k == 0)
    def _():
        acc_ref[...] = jnp.zeros_like(acc_ref)

    acc_ref[...] += jnp.dot(p_ref[...], w_ref[...],
                            preferred_element_type=jnp.float32)

    @pl.when(k == pl.num_programs(2) - 1)
    def _():
        o_ref[...] = (acc_ref[...] + b_ref[...]).astype(o_ref.dtype)


def _conv_im2col(x, weight, bias, padding, cdt, budget):
    N, C, H, W = x.shape
    OC = weight.shape[0]
    K, S = 3, 2
    OH = (H + 2 * padding - K) // S + 1
    OW = (W + 2 * padding - K) // S + 1

    # TODO(synk): this path still materializes the 9x patch slab; it is only used
    # when a whole padded image does not fit the fused kernel's VMEM budget.
    xh = jnp.transpose(x, (0, 2, 3, 1)).astype(cdt)
    xp = jnp.pad(xh, ((0, 0), (padding, padding), (padding, padding), (0, 0)))
    taps = [xp[:, kh:kh + S * (OH - 1) + 1:S, kw:kw + S * (OW - 1) + 1:S, :]
            for kh in range(K) for kw in range(K)]
    p_mat = jnp.concatenate(taps, axis=-1).reshape(N * OH * OW, K * K * C)

    w_mat = jnp.transpose(weight, (2, 3, 1, 0)).reshape(K * K * C, OC).astype(cdt)
    b_mat = bias.reshape(1, OC).astype(jnp.float32)

    M, Kd = p_mat.shape
    OC_p = _round_up(OC, 128)
    TN = 256 if OC_p % 256 == 0 else 128
    if OC_p != OC:
        w_mat = jnp.pad(w_mat, ((0, 0), (0, OC_p - OC)))
        b_mat = jnp.pad(b_mat, ((0, 0), (0, OC_p - OC)))

    # K: full-extent block when modest (single reduction step, no K padding copy).
    if Kd <= 4096:
        TK, Kd_p = Kd, Kd
    else:
        TK = 2048
        Kd_p = _round_up(Kd, TK)
        p_mat = jnp.pad(p_mat, ((0, 0), (0, Kd_p - Kd)))    # rare (very large C)
        w_mat = jnp.pad(w_mat, ((0, Kd_p - Kd), (0, 0)))

    # M: largest divisor tile (no jnp.pad copy of the patch matrix).
    TM = M
    for t in (512, 256, 128, 64, 32, 16, 8):
        if M % t == 0:
            TM = t
            break
    # TODO(synk): if M has no small divisor, a single full-extent M block is used.

    out_mat = pl.pallas_call(
        _conv_matmul_kernel,
        out_shape=jax.ShapeDtypeStruct((M, OC_p), x.dtype),
        grid=(M // TM, OC_p // TN, Kd_p // TK),
        in_specs=[
            pl.BlockSpec((TM, TK), lambda i, j, k: (i, k)),
            pl.BlockSpec((TK, TN), lambda i, j, k: (k, j)),
            pl.BlockSpec((1, TN), lambda i, j, k: (0, j)),
        ],
        out_specs=pl.BlockSpec((TM, TN), lambda i, j, k: (i, j)),
        scratch_shapes=[pltpu.VMEM((TM, TN), jnp.float32)],
        compiler_params=pltpu.CompilerParams(
            dimension_semantics=("parallel", "parallel", "arbitrary"),
            vmem_limit_bytes=budget),
    )(p_mat, w_mat, b_mat)

    out = out_mat[:, :OC] if OC_p != OC else out_mat
    out = out.reshape(N, OH, OW, OC)
    return jnp.transpose(out, (0, 3, 1, 2))


def downsample_conv2d(x, weight, bias, padding=1, compute_dtype=jnp.bfloat16):
    """Conv2d(C, OC, kernel=3, stride=2, padding=padding) on NCHW input."""
    global _FUSED_CONV_DISABLED
    N, C, H, W = x.shape
    OC = weight.shape[0]
    OH = (H + 2 * padding - 3) // 2 + 1
    OW = (W + 2 * padding - 3) // 2 + 1
    assert OH > 0 and OW > 0
    cdt = compute_dtype or x.dtype
    budget = _vmem_budget()

    # VMEM working-set estimate of the fused (whole padded image per step) path.
    OWpad = _round_up(OW, 8)
    OC_p = _round_up(OC, 128)
    TN = 256 if OC_p % 256 == 0 else 128
    cbytes, xbytes = _itemsize(cdt), _itemsize(x.dtype)
    M_img = OH * OWpad
    need = (2 * 4 * (OH + 1) * _round_up(OWpad + 1, 8) * C * cbytes   # phase block x2 bufs
            + 2 * 9 * C * TN * cbytes                                 # weight tap block
            + 2 * M_img * TN * xbytes                                 # output tile
            + M_img * TN * 4                                          # f32 accumulator
            + 4 * M_img * C * 4                                       # window temporaries
            + 2 * TN * 4)

    if (not _FUSED_CONV_DISABLED) and need * 1.3 <= budget:
        try:
            return _conv_fused(x, weight, bias, padding, cdt, budget)
        except Exception:
            _FUSED_CONV_DISABLED = True     # unsupported lowering -> permanent fallback
    return _conv_im2col(x, weight, bias, padding, cdt, budget)


# ----------------------------- avg-pool kernel --------------------------------

def _avgpool_kernel(x_ref, p_ref, o_ref):
    """2x2/2 average pool.

    x_ref: (TR, 2*W)  each row = [top input row | bottom input row] of a band
    p_ref: (W, OW)    resident pairing matrix, P[j, k] = (j // 2 == k)
    o_ref: (TR, OW)
    """
    w2 = x_ref.shape[-1]
    w = w2 // 2
    s = x_ref[:, :w].astype(jnp.float32) + x_ref[:, w:].astype(jnp.float32)
    # TODO(synk): for very wide images a lane-strided-load fold (or a lane-dense
    # full-plane output block) would avoid the extra MXU work of this matmul.
    out = 0.25 * jnp.dot(s, p_ref[...], preferred_element_type=jnp.float32)
    o_ref[...] = out.astype(o_ref.dtype)


def _pick_pool_tile(rows, w_in, ow, xbytes, budget):
    def need(tr):
        return (2 * tr * 2 * w_in * xbytes      # double-buffered input tile
                + 2 * tr * ow * xbytes          # double-buffered output tile
                + 2 * w_in * ow * 4             # resident pairing matrix
                + 2 * tr * w_in * 4)            # f32 temporaries
    for t in (1024, 512, 256, 128, 64, 32, 16, 8):
        if rows % t == 0 and need(t) <= budget:
            return t
    if need(rows) <= budget:
        return rows
    # TODO(synk): boundary-masked (cdiv) grid for awkward row counts / huge inputs.
    for t in (1024, 512, 256, 128, 64, 32, 16, 8):
        if need(t) <= budget:
            return t
    return 8


def downsample_avgpool2d(x):
    """AvgPool2d(kernel_size=2, stride=2) on NCHW input (floor semantics)."""
    N, C, H, W = x.shape
    OH, OW = H // 2, W // 2
    if (H % 2) or (W % 2):
        x = x[:, :, :2 * OH, :2 * OW]       # PyTorch floor behavior
        W = 2 * OW

    rows = N * C * OH
    x2 = x.reshape(rows, 2 * W)             # contiguous -> free reshape
    jcol = jnp.arange(W, dtype=jnp.int32)[:, None]
    kcol = jnp.arange(OW, dtype=jnp.int32)[None, :]
    pairing = ((jcol // 2) == kcol).astype(jnp.float32)      # (W, OW), resident

    budget = _vmem_budget()
    TR = _pick_pool_tile(rows, W, OW, _itemsize(x.dtype), budget)

    out = pl.pallas_call(
        _avgpool_kernel,
        out_shape=jax.ShapeDtypeStruct((rows, OW), x.dtype),
        grid=(pl.cdiv(rows, TR),),
        in_specs=[pl.BlockSpec((TR, 2 * W), lambda i: (i, 0)),
                  pl.BlockSpec((W, OW), lambda i: (0, 0))],
        out_specs=pl.BlockSpec((TR, OW), lambda i: (i, 0)),
        compiler_params=pltpu.CompilerParams(
            dimension_semantics=("parallel",),
            vmem_limit_bytes=budget),
    )(x2, pairing)
    return out.reshape(N, C, OH, OW)


# ----------------------------- module wrapper ---------------------------------

class Downsample:
    """JAX/Pallas port of Downsample (dims=2)."""

    def __init__(self, channels, use_conv, dims=2, out_channels=None,
                 padding=1, key=None, compute_dtype=jnp.bfloat16):
        assert dims == 2, "only dims=2 implemented"
        # TODO(synk): dims=1 and dims=3 variants not implemented.
        self.channels = channels
        self.out_channels = out_channels or channels
        self.use_conv = use_conv
        self.padding = padding
        self.compute_dtype = compute_dtype
        if use_conv:
            key = key if key is not None else jax.random.PRNGKey(0)
            kw, kb = jax.random.split(key)
            fan_in = channels * 3 * 3
            bound = 1.0 / (fan_in ** 0.5)
            # deterministic synthetic params (matches nn.Conv2d param shapes)
            self.weight = jax.random.uniform(
                kw, (self.out_channels, channels, 3, 3),
                minval=-bound, maxval=bound, dtype=jnp.float32)
            self.bias = jax.random.uniform(
                kb, (self.out_channels,), minval=-bound, maxval=bound,
                dtype=jnp.float32)
        else:
            assert self.channels == self.out_channels

    def __call__(self, x):
        assert x.shape[1] == self.channels
        if self.use_conv:
            return downsample_conv2d(x, self.weight, self.bias, self.padding,
                                     compute_dtype=self.compute_dtype)
        return downsample_avgpool2d(x)


# ---------------------------------- main --------------------------------------

if __name__ == "__main__":
    key = jax.random.PRNGKey(0)
    kx, kp = jax.random.split(key)

    N, C, H, W = 2, 4, 16, 16
    OC = 8
    x = jax.random.normal(kx, (N, C, H, W), dtype=jnp.float32)

    # --- conv branch (use_conv=True), bf16 operands / f32 accumulation ---
    ds_conv = Downsample(C, use_conv=True, dims=2, out_channels=OC, key=kp)
    y_conv = ds_conv(x)
    jax.block_until_ready(y_conv)
    assert y_conv.shape == (N, OC, H // 2, W // 2)

    ref_conv = lax.conv_general_dilated(
        x.astype(jnp.bfloat16), ds_conv.weight.astype(jnp.bfloat16),
        window_strides=(2, 2), padding=[(1, 1), (1, 1)],
        dimension_numbers=("NCHW", "OIHW", "NCHW"),
        preferred_element_type=jnp.float32,
    ) + ds_conv.bias[None, :, None, None]
    assert jnp.allclose(y_conv, ref_conv, rtol=1e-2, atol=1e-2)

    # also validate the im2col fallback path (used for very large activations)
    y_fb = _conv_im2col(x, ds_conv.weight, ds_conv.bias, 1, jnp.bfloat16,
                        _vmem_budget())
    jax.block_until_ready(y_fb)
    assert jnp.allclose(y_fb, ref_conv, rtol=1e-2, atol=1e-2)

    # --- avg-pool branch (use_conv=False) ---
    ds_pool = Downsample(C, use_conv=False, dims=2)
    y_pool = ds_pool(x)
    jax.block_until_ready(y_pool)
    assert y_pool.shape == (N, C, H // 2, W // 2)
    ref_pool = x.reshape(N, C, H // 2, 2, W // 2, 2).mean(axis=(3, 5))
    assert jnp.allclose(y_pool, ref_pool, rtol=1e-5, atol=1e-5)

    # --- avg-pool with odd spatial dims (floor behavior) ---
    x_odd = jax.random.normal(kp, (1, 4, 7, 9), dtype=jnp.float32)
    y_odd = downsample_avgpool2d(x_odd)
    jax.block_until_ready(y_odd)
    ref_odd = x_odd[:, :, :6, :8].reshape(1, 4, 3, 2, 4, 2).mean(axis=(3, 5))
    assert y_odd.shape == (1, 4, 3, 4)
    assert jnp.allclose(y_odd, ref_odd, rtol=1e-5, atol=1e-5)

    print("KERNEL_OK")
</pallas_src>

<mosaic_0001>
module attributes {stable_mosaic.version = 11 : i64} {
  func.func @_fused_conv_kernel(%arg0: i32, %arg1: i32, %arg2: memref<1x2x2x9x9x4xbf16, #tpu.memory_space<vmem>>, %arg3: memref<9x4x128xbf16, #tpu.memory_space<vmem>>, %arg4: memref<1x128xf32, #tpu.memory_space<vmem>>, %arg5: memref<64x128xf32, #tpu.memory_space<vmem>>) attributes {dimension_semantics = [#tpu.dimension_semantics<parallel>, #tpu.dimension_semantics<parallel>], iteration_bounds = array<i64: 2, 1>, scalar_prefetch = 0 : i64, scratch_operands = 0 : i64, tpu.core_type = #tpu.core_type<tc>, window_params = [{transform_indices = @transform_0, window_bounds = array<i64: 1, 2, 2, 9, 9, 4>}, {transform_indices = @transform_1, window_bounds = array<i64: 9, 4, 128>}, {transform_indices = @transform_2, window_bounds = array<i64: 1, 128>}, {transform_indices = @transform_3, window_bounds = array<i64: 64, 128>}]} {
    %cst = arith.constant 0.000000e+00 : f32
    %0 = vector.broadcast %cst : f32 to vector<64x128xf32>
    %c0 = arith.constant 0 : index
    %c0_0 = arith.constant 0 : index
    %c0_1 = arith.constant 0 : index
    %c0_2 = arith.constant 0 : index
    %c0_3 = arith.constant 0 : index
    %c0_4 = arith.constant 0 : index
    %1 = vector.load %arg2[%c0, %c0_0, %c0_1, %c0_2, %c0_3, %c0_4] : memref<1x2x2x9x9x4xbf16, #tpu.memory_space<vmem>>, vector<1x1x1x8x8x4xbf16>
    %2 = vector.shape_cast %1 : vector<1x1x1x8x8x4xbf16> to vector<8x8x4xbf16>
    %3 = vector.shape_cast %2 : vector<8x8x4xbf16> to vector<64x4xbf16>
    %c0_5 = arith.constant 0 : index
    %c0_6 = arith.constant 0 : index
    %c0_7 = arith.constant 0 : index
    %4 = vector.load %arg3[%c0_5, %c0_6, %c0_7] : memref<9x4x128xbf16, #tpu.memory_space<vmem>>, vector<1x4x128xbf16>
    %5 = vector.shape_cast %4 : vector<1x4x128xbf16> to vector<4x128xbf16>
    %cst_8 = arith.constant dense<0.000000e+00> : vector<64x128xf32>
    %6 = tpu.matmul %3, %5, %cst_8 {dimension_numbers = #tpu.dot_dimension_numbers<[1], [0], [0], [1], [0, 0, 1, 1], [], []>} : vector<64x4xbf16>, vector<4x128xbf16>, vector<64x128xf32> -> vector<64x128xf32>
    %7 = arith.addf %0, %6 : vector<64x128xf32>
    %c0_9 = arith.constant 0 : index
    %c0_10 = arith.constant 0 : index
    %c1 = arith.constant 1 : index
    %c0_11 = arith.constant 0 : index
    %c0_12 = arith.constant 0 : index
    %c0_13 = arith.constant 0 : index
    %8 = vector.load %arg2[%c0_9, %c0_10, %c1, %c0_11, %c0_12, %c0_13] : memref<1x2x2x9x9x4xbf16, #tpu.memory_space<vmem>>, vector<1x1x1x8x8x4xbf16>
    %9 = vector.shape_cast %8 : vector<1x1x1x8x8x4xbf16> to vector<8x8x4xbf16>
    %10 = vector.shape_cast %9 : vector<8x8x4xbf16> to vector<64x4xbf16>
    %c1_14 = arith.constant 1 : index
    %c0_15 = arith.constant 0 : index
    %c0_16 = arith.constant 0 : index
    %11 = vector.load %arg3[%c1_14, %c0_15, %c0_16] : memref<9x4x128xbf16, #tpu.memory_space<vmem>>, vector<1x4x128xbf16>
    %12 = vector.shape_cast %11 : vector<1x4x128xbf16> to vector<4x128xbf16>
    %cst_17 = arith.constant dense<0.000000e+00> : vector<64x128xf32>
    %13 = tpu.matmul %10, %12, %cst_17 {dimension_numbers = #tpu.dot_dimension_numbers<[1], [0], [0], [1], [0, 0, 1, 1], [], []>} : vector<64x4xbf16>, vector<4x128xbf16>, vector<64x128xf32> -> vector<64x128xf32>
    %14 = arith.addf %7, %13 : vector<64x128xf32>
    %c0_18 = arith.constant 0 : index
    %c0_19 = arith.constant 0 : index
    %c0_20 = arith.constant 0 : index
    %c0_21 = arith.constant 0 : index
    %c1_22 = arith.constant 1 : index
    %c0_23 = arith.constant 0 : index
    %15 = vector.load %arg2[%c0_18, %c0_19, %c0_20, %c0_21, %c1_22, %c0_23] : memref<1x2x2x9x9x4xbf16, #tpu.memory_space<vmem>>, vector<1x1x1x8x8x4xbf16>
    %16 = vector.shape_cast %15 : vector<1x1x1x8x8x4xbf16> to vector<8x8x4xbf16>
    %17 = vector.shape_cast %16 : vector<8x8x4xbf16> to vector<64x4xbf16>
    %c2 = arith.constant 2 : index
    %c0_24 = arith.constant 0 : index
    %c0_25 = arith.constant 0 : index
    %18 = vector.load %arg3[%c2, %c0_24, %c0_25] : memref<9x4x128xbf16, #tpu.memory_space<vmem>>, vector<1x4x128xbf16>
    %19 = vector.shape_cast %18 : vector<1x4x128xbf16> to vector<4x128xbf16>
    %cst_26 = arith.constant dense<0.000000e+00> : vector<64x128xf32>
    %20 = tpu.matmul %17, %19, %cst_26 {dimension_numbers = #tpu.dot_dimension_numbers<[1], [0], [0], [1], [0, 0, 1, 1], [], []>} : vector<64x4xbf16>, vector<4x128xbf16>, vector<64x128xf32> -> vector<64x128xf32>
    %21 = arith.addf %14, %20 : vector<64x128xf32>
    %c0_27 = arith.constant 0 : index
    %c1_28 = arith.constant 1 : index
    %c0_29 = arith.constant 0 : index
    %c0_30 = arith.constant 0 : index
    %c0_31 = arith.constant 0 : index
    %c0_32 = arith.constant 0 : index
    %22 = vector.load %arg2[%c0_27, %c1_28, %c0_29, %c0_30, %c0_31, %c0_32] : memref<1x2x2x9x9x4xbf16, #tpu.memory_space<vmem>>, vector<1x1x1x8x8x4xbf16>
    %23 = vector.shape_cast %22 : vector<1x1x1x8x8x4xbf16> to vector<8x8x4xbf16>
    %24 = vector.shape_cast %23 : vector<8x8x4xbf16> to vector<64x4xbf16>
    %c3 = arith.constant 3 : index
    %c0_33 = arith.constant 0 : index
    %c0_34 = arith.constant 0 : index
    %25 = vector.load %arg3[%c3, %c0_33, %c0_34] : memref<9x4x128xbf16, #tpu.memory_space<vmem>>, vector<1x4x128xbf16>
    %26 = vector.shape_cast %25 : vector<1x4x128xbf16> to vector<4x128xbf16>
    %cst_35 = arith.constant dense<0.000000e+00> : vector<64x128xf32>
    %27 = tpu.matmul %24, %26, %cst_35 {dimension_numbers = #tpu.dot_dimension_numbers<[1], [0], [0], [1], [0, 0, 1, 1], [], []>} : vector<64x4xbf16>, vector<4x128xbf16>, vector<64x128xf32> -> vector<64x128xf32>
    %28 = arith.addf %21, %27 : vector<64x128xf32>
    %c0_36 = arith.constant 0 : index
    %c1_37 = arith.constant 1 : index
    %c1_38 = arith.constant 1 : index
    %c0_39 = arith.constant 0 : index
    %c0_40 = arith.constant 0 : index
    %c0_41 = arith.constant 0 : index
    %29 = vector.load %arg2[%c0_36, %c1_37, %c1_38, %c0_39, %c0_40, %c0_41] : memref<1x2x2x9x9x4xbf16, #tpu.memory_space<vmem>>, vector<1x1x1x8x8x4xbf16>
    %30 = vector.shape_cast %29 : vector<1x1x1x8x8x4xbf16> to vector<8x8x4xbf16>
    %31 = vector.shape_cast %30 : vector<8x8x4xbf16> to vector<64x4xbf16>
    %c4 = arith.constant 4 : index
    %c0_42 = arith.constant 0 : index
    %c0_43 = arith.constant 0 : index
    %32 = vector.load %arg3[%c4, %c0_42, %c0_43] : memref<9x4x128xbf16, #tpu.memory_space<vmem>>, vector<1x4x128xbf16>
    %33 = vector.shape_cast %32 : vector<1x4x128xbf16> to vector<4x128xbf16>
    %cst_44 = arith.constant dense<0.000000e+00> : vector<64x128xf32>
    %34 = tpu.matmul %31, %33, %cst_44 {dimension_numbers = #tpu.dot_dimension_numbers<[1], [0], [0], [1], [0, 0, 1, 1], [], []>} : vector<64x4xbf16>, vector<4x128xbf16>, vector<64x128xf32> -> vector<64x128xf32>
    %35 = arith.addf %28, %34 : vector<64x128xf32>
    %c0_45 = arith.constant 0 : index
    %c1_46 = arith.constant 1 : index
    %c0_47 = arith.constant 0 : index
    %c0_48 = arith.constant 0 : index
    %c1_49 = arith.constant 1 : index
    %c0_50 = arith.constant 0 : index
    %36 = vector.load %arg2[%c0_45, %c1_46, %c0_47, %c0_48, %c1_49, %c0_50] : memref<1x2x2x9x9x4xbf16, #tpu.memory_space<vmem>>, vector<1x1x1x8x8x4xbf16>
    %37 = vector.shape_cast %36 : vector<1x1x1x8x8x4xbf16> to vector<8x8x4xbf16>
    %38 = vector.shape_cast %37 : vector<8x8x4xbf16> to vector<64x4xbf16>
    %c5 = arith.constant 5 : index
    %c0_51 = arith.constant 0 : index
    %c0_52 = arith.constant 0 : index
    %39 = vector.load %arg3[%c5, %c0_51, %c0_52] : memref<9x4x128xbf16, #tpu.memory_space<vmem>>, vector<1x4x128xbf16>
    %40 = vector.shape_cast %39 : vector<1x4x128xbf16> to vector<4x128xbf16>
    %cst_53 = arith.constant dense<0.000000e+00> : vector<64x128xf32>
    %41 = tpu.matmul %38, %40, %cst_53 {dimension_numbers = #tpu.dot_dimension_numbers<[1], [0], [0], [1], [0, 0, 1, 1], [], []>} : vector<64x4xbf16>, vector<4x128xbf16>, vector<64x128xf32> -> vector<64x128xf32>
    %42 = arith.addf %35, %41 : vector<64x128xf32>
    %c0_54 = arith.constant 0 : index
    %c0_55 = arith.constant 0 : index
    %c0_56 = arith.constant 0 : index
    %c1_57 = arith.constant 1 : index
    %c0_58 = arith.constant 0 : index
    %c0_59 = arith.constant 0 : index
    %43 = vector.load %arg2[%c0_54, %c0_55, %c0_56, %c1_57, %c0_58, %c0_59] : memref<1x2x2x9x9x4xbf16, #tpu.memory_space<vmem>>, vector<1x1x1x8x8x4xbf16>
    %44 = vector.shape_cast %43 : vector<1x1x1x8x8x4xbf16> to vector<8x8x4xbf16>
    %45 = vector.shape_cast %44 : vector<8x8x4xbf16> to vector<64x4xbf16>
    %c6 = arith.constant 6 : index
    %c0_60 = arith.constant 0 : index
    %c0_61 = arith.constant 0 : index
    %46 = vector.load %arg3[%c6, %c0_60, %c0_61] : memref<9x4x128xbf16, #tpu.memory_space<vmem>>, vector<1x4x128xbf16>
    %47 = vector.shape_cast %46 : vector<1x4x128xbf16> to vector<4x128xbf16>
    %cst_62 = arith.constant dense<0.000000e+00> : vector<64x128xf32>
    %48 = tpu.matmul %45, %47, %cst_62 {dimension_numbers = #tpu.dot_dimension_numbers<[1], [0], [0], [1], [0, 0, 1, 1], [], []>} : vector<64x4xbf16>, vector<4x128xbf16>, vector<64x128xf32> -> vector<64x128xf32>
    %49 = arith.addf %42, %48 : vector<64x128xf32>
    %c0_63 = arith.constant 0 : index
    %c0_64 = arith.constant 0 : index
    %c1_65 = arith.constant 1 : index
    %c1_66 = arith.constant 1 : index
    %c0_67 = arith.constant 0 : index
    %c0_68 = arith.constant 0 : index
    %50 = vector.load %arg2[%c0_63, %c0_64, %c1_65, %c1_66, %c0_67, %c0_68] : memref<1x2x2x9x9x4xbf16, #tpu.memory_space<vmem>>, vector<1x1x1x8x8x4xbf16>
    %51 = vector.shape_cast %50 : vector<1x1x1x8x8x4xbf16> to vector<8x8x4xbf16>
    %52 = vector.shape_cast %51 : vector<8x8x4xbf16> to vector<64x4xbf16>
    %c7 = arith.constant 7 : index
    %c0_69 = arith.constant 0 : index
    %c0_70 = arith.constant 0 : index
    %53 = vector.load %arg3[%c7, %c0_69, %c0_70] : memref<9x4x128xbf16, #tpu.memory_space<vmem>>, vector<1x4x128xbf16>
    %54 = vector.shape_cast %53 : vector<1x4x128xbf16> to vector<4x128xbf16>
    %cst_71 = arith.constant dense<0.000000e+00> : vector<64x128xf32>
    %55 = tpu.matmul %52, %54, %cst_71 {dimension_numbers = #tpu.dot_dimension_numbers<[1], [0], [0], [1], [0, 0, 1, 1], [], []>} : vector<64x4xbf16>, vector<4x128xbf16>, vector<64x128xf32> -> vector<64x128xf32>
    %56 = arith.addf %49, %55 : vector<64x128xf32>
    %c0_72 = arith.constant 0 : index
    %c0_73 = arith.constant 0 : index
    %c0_74 = arith.constant 0 : index
    %c1_75 = arith.constant 1 : index
    %c1_76 = arith.constant 1 : index
    %c0_77 = arith.constant 0 : index
    %57 = vector.load %arg2[%c0_72, %c0_73, %c0_74, %c1_75, %c1_76, %c0_77] : memref<1x2x2x9x9x4xbf16, #tpu.memory_space<vmem>>, vector<1x1x1x8x8x4xbf16>
    %58 = vector.shape_cast %57 : vector<1x1x1x8x8x4xbf16> to vector<8x8x4xbf16>
    %59 = vector.shape_cast %58 : vector<8x8x4xbf16> to vector<64x4xbf16>
    %c8 = arith.constant 8 : index
    %c0_78 = arith.constant 0 : index
    %c0_79 = arith.constant 0 : index
    %60 = vector.load %arg3[%c8, %c0_78, %c0_79] : memref<9x4x128xbf16, #tpu.memory_space<vmem>>, vector<1x4x128xbf16>
    %61 = vector.shape_cast %60 : vector<1x4x128xbf16> to vector<4x128xbf16>
    %cst_80 = arith.constant dense<0.000000e+00> : vector<64x128xf32>
    %62 = tpu.matmul %59, %61, %cst_80 {dimension_numbers = #tpu.dot_dimension_numbers<[1], [0], [0], [1], [0, 0, 1, 1], [], []>} : vector<64x4xbf16>, vector<4x128xbf16>, vector<64x128xf32> -> vector<64x128xf32>
    %63 = arith.addf %56, %62 : vector<64x128xf32>
    %c0_81 = arith.constant 0 : index
    %c0_82 = arith.constant 0 : index
    %64 = vector.load %arg4[%c0_81, %c0_82] : memref<1x128xf32, #tpu.memory_space<vmem>>, vector<1x128xf32>
    %65 = vector.broadcast %64 : vector<1x128xf32> to vector<64x128xf32>
    %66 = arith.addf %63, %65 : vector<64x128xf32>
    %c0_83 = arith.constant 0 : index
    %c0_84 = arith.constant 0 : index
    %67 = vector.load %arg5[%c0_83, %c0_84] : memref<64x128xf32, #tpu.memory_space<vmem>>, vector<64x128xf32>
    tpu.vector_store %arg5[%c0_83, %c0_84], %66 {strides = array<i32>} : memref<64x128xf32, #tpu.memory_space<vmem>>, vector<64x128xf32>,
    return
  }
  func.func @transform_0(%arg0: i32, %arg1: i32) -> (i32, i32, i32, i32, i32, i32) {
    %c0_i32 = arith.constant 0 : i32
    %c0_i32_0 = arith.constant 0 : i32
    %c0_i32_1 = arith.constant 0 : i32
    %c0_i32_2 = arith.constant 0 : i32
    %c0_i32_3 = arith.constant 0 : i32
    %c0_i32_4 = arith.constant 0 : i32
    return %arg0, %c0_i32, %c0_i32_0, %c0_i32_1, %c0_i32_2, %c0_i32_3 : i32, i32, i32, i32, i32, i32
  }
  func.func @transform_1(%arg0: i32, %arg1: i32) -> (i32, i32, i32) {
    %c0_i32 = arith.constant 0 : i32
    %c0_i32_0 = arith.constant 0 : i32
    %c0_i32_1 = arith.constant 0 : i32
    return %c0_i32, %c0_i32_0, %arg1 : i32, i32, i32
  }
  func.func @transform_2(%arg0: i32, %arg1: i32) -> (i32, i32) {
    %c0_i32 = arith.constant 0 : i32
    %c0_i32_0 = arith.constant 0 : i32
    return %c0_i32, %arg1 : i32, i32
  }
  func.func @transform_3(%arg0: i32, %arg1: i32) -> (i32, i32) {
    %c0_i32 = arith.constant 0 : i32
    return %arg0, %arg1 : i32, i32
  }
}

module attributes {stable_mosaic.version = 11 : i64} {
  func.func @_conv_matmul_kernel(%arg0: i32, %arg1: i32, %arg2: i32, %arg3: memref<128x36xbf16, #tpu.memory_space<vmem>>, %arg4: memref<36x128xbf16, #tpu.memory_space<vmem>>, %arg5: memref<1x128xf32, #tpu.memory_space<vmem>>, %arg6: memref<128x128xf32, #tpu.memory_space<vmem>>, %arg7: memref<128x128xf32, #tpu.memory_space<vmem>>) attributes {dimension_semantics = [#tpu.dimension_semantics<parallel>, #tpu.dimension_semantics<parallel>, #tpu.dimension_semantics<arbitrary>], iteration_bounds = array<i64: 1, 1, 1>, scalar_prefetch = 0 : i64, scratch_operands = 1 : i64, tpu.core_type = #tpu.core_type<tc>, window_params = [{transform_indices = @transform_0, window_bounds = array<i64: 128, 36>}, {transform_indices = @transform_1, window_bounds = array<i64: 36, 128>}, {transform_indices = @transform_2, window_bounds = array<i64: 1, 128>}, {transform_indices = @transform_3, window_bounds = array<i64: 128, 128>}]} {
    %c0_i32 = arith.constant 0 : i32
    %0 = arith.cmpi eq, %arg2, %c0_i32 : i32
    %1 = arith.extui %0 : i1 to i32
    %c0_i32_0 = arith.constant 0 : i32
    %2 = arith.cmpi ne, %1, %c0_i32_0 : i32
    scf.if %2 {
      %cst_10 = arith.constant 0.000000e+00 : f32
      %12 = vector.broadcast %cst_10 : f32 to vector<128x128xf32>
      %c0_11 = arith.constant 0 : index
      %c0_12 = arith.constant 0 : index
      %13 = vector.load %arg7[%c0_11, %c0_12] : memref<128x128xf32, #tpu.memory_space<vmem>>, vector<128x128xf32>
      tpu.vector_store %arg7[%c0_11, %c0_12], %12 {strides = array<i32>} : memref<128x128xf32, #tpu.memory_space<vmem>>, vector<128x128xf32>,
    } else {
    }
    %c0 = arith.constant 0 : index
    %c0_1 = arith.constant 0 : index
    %3 = vector.load %arg7[%c0, %c0_1] : memref<128x128xf32, #tpu.memory_space<vmem>>, vector<128x128xf32>
    %c0_2 = arith.constant 0 : index
    %c0_3 = arith.constant 0 : index
    %4 = vector.load %arg3[%c0_2, %c0_3] : memref<128x36xbf16, #tpu.memory_space<vmem>>, vector<128x36xbf16>
    %c0_4 = arith.constant 0 : index
    %c0_5 = arith.constant 0 : index
    %5 = vector.load %arg4[%c0_4, %c0_5] : memref<36x128xbf16, #tpu.memory_space<vmem>>, vector<36x128xbf16>
    %cst = arith.constant dense<0.000000e+00> : vector<128x128xf32>
    %6 = tpu.matmul %4, %5, %cst {dimension_numbers = #tpu.dot_dimension_numbers<[1], [0], [0], [1], [0, 0, 1, 1], [], []>} : vector<128x36xbf16>, vector<36x128xbf16>, vector<128x128xf32> -> vector<128x128xf32>
    %7 = arith.addf %3, %6 : vector<128x128xf32>
    %c0_6 = arith.constant 0 : index
    %c0_7 = arith.constant 0 : index
    %8 = vector.load %arg7[%c0_6, %c0_7] : memref<128x128xf32, #tpu.memory_space<vmem>>, vector<128x128xf32>
    tpu.vector_store %arg7[%c0_6, %c0_7], %7 {strides = array<i32>} : memref<128x128xf32, #tpu.memory_space<vmem>>, vector<128x128xf32>,
    %c0_i32_8 = arith.constant 0 : i32
    %9 = arith.cmpi eq, %arg2, %c0_i32_8 : i32
    %10 = arith.extui %9 : i1 to i32
    %c0_i32_9 = arith.constant 0 : i32
    %11 = arith.cmpi ne, %10, %c0_i32_9 : i32
    scf.if %11 {
      %c0_10 = arith.constant 0 : index
      %c0_11 = arith.constant 0 : index
      %12 = vector.load %arg7[%c0_10, %c0_11] : memref<128x128xf32, #tpu.memory_space<vmem>>, vector<128x128xf32>
      %c0_12 = arith.constant 0 : index
      %c0_13 = arith.constant 0 : index
      %13 = vector.load %arg5[%c0_12, %c0_13] : memref<1x128xf32, #tpu.memory_space<vmem>>, vector<1x128xf32>
      %14 = vector.broadcast %13 : vector<1x128xf32> to vector<128x128xf32>
      %15 = arith.addf %12, %14 : vector<128x128xf32>
      %c0_14 = arith.constant 0 : index
      %c0_15 = arith.constant 0 : index
      %16 = vector.load %arg6[%c0_14, %c0_15] : memref<128x128xf32, #tpu.memory_space<vmem>>, vector<128x128xf32>
      tpu.vector_store %arg6[%c0_14, %c0_15], %15 {strides = array<i32>} : memref<128x128xf32, #tpu.memory_space<vmem>>, vector<128x128xf32>,
    } else {
    }
    return
  }
  func.func @transform_0(%arg0: i32, %arg1: i32, %arg2: i32) -> (i32, i32) {
    %c0_i32 = arith.constant 0 : i32
    return %arg0, %arg2 : i32, i32
  }
  func.func @transform_1(%arg0: i32, %arg1: i32, %arg2: i32) -> (i32, i32) {
    %c0_i32 = arith.constant 0 : i32
    return %arg2, %arg1 : i32, i32
  }
  func.func @transform_2(%arg0: i32, %arg1: i32, %arg2: i32) -> (i32, i32) {
    %c0_i32 = arith.constant 0 : i32
    %c0_i32_0 = arith.constant 0 : i32
    return %c0_i32, %arg1 : i32, i32
  }
  func.func @transform_3(%arg0: i32, %arg1: i32, %arg2: i32) -> (i32, i32) {
    %c0_i32 = arith.constant 0 : i32
    return %arg0, %arg1 : i32, i32
  }
}

</mosaic_0001>

<llo_original>
// kernel: tpu_custom_call.1
$region0: #{tpu_custom_call.1}
  #allocation0 [shape = 'u32[]', space=smem, size = 0x4, offset = 0x4, fixed_abs, tag = 'smem constant byte address 0x4 - core index']
  #allocation1 [shape = 'u32[144,128]{1,0:T(1,128)}', space=vmem, size = 0x12000, scoped, tag = 'internal scratch']
  %s0 = inlined_call_operand.vmem [shape: bf16[2,2,2,9,9,4], index: 0, kind: input, shape index: {}]
  %s1 = inlined_call_operand.vmem [shape: bf16[9,4,128], index: 1, kind: input, shape index: {}]
  %s2 = inlined_call_operand.vmem [shape: f32[1,128], index: 2, kind: input, shape index: {}]
  %s3 = inlined_call_operand.hbm [shape: f32[128,128], index: 3, kind: output, shape index: {}]
  %s4 = sld [smem:[#allocation0]]
  $region45: #{tpu_custom_call.1} parent=0
    _
  %s6 = ssub.s32 1, %s4
  %s7 = scalar_select 0, %s6, %s4
  $region1: #{tpu_custom_call.1} parent=0
    #allocation2 [shape = 'u8[65536]{0}', space=vmem, size = 0x10000, scoped, tag = 'output window, operand 0']
    #allocation3 [shape = 's32[2]{0}', space=sflag, size = 0x8, scoped, tag = 'scoped memory for tpu_custom_call.1']
    %8 = vsyncpa [#allocation3], 0
    %s9 = scalar_lea.sflag [#allocation3], 1
    %10 = vsyncpa %s9, 0
    loop: start=0, step=1, limit=4
    $region2: #{tpu_custom_call.1} parent=1 // loop_pre_header
      _
    $region3: #{tpu_custom_call.1} parent=1 // loop_header
      %s12 = sphi 0, %s16
      %p13 = scmp.ge.s32.totalorder %s12, 4
      %s19 = sphi 0, %s31
      %s20 = sphi 0, %s27
      %s21 = sphi 0, %s19
      %s22 = sphi 0, %s20
      %s23 = sphi 0, %s21
      %s24 = sphi 0, %s22
      %s34 = sphi 0, %s36
      %s37 = sphi 0, %s34
      %s38 = sphi 0, %s37
      %s54 = sphi 0, %s38
      %s60 = sphi 0, %s62
      %s63 = sphi 0, %s60
      %s64 = sphi 0, %s63
      %s80 = sphi 0, %s64
      %s86 = sphi 0, %s88
      %s89 = sphi 0, %s86
      %s90 = sphi 0, %s89
      %s106 = sphi 0, %s90
      %s114 = sphi 0, %s116
      %s117 = sphi 0, %s114
      %s118 = sphi 0, %s117
      %s134 = sphi 0, %s118
    $region4: #{tpu_custom_call.1} parent=1 // loop_header_branch
      %15 = sbr.rel (%p13) target = $region8
    $region5: #{tpu_custom_call.1} parent=1 // loop_body
      %s17 = ssub.s32 %s12, 1
      %s18 = ssub.s32 %s12, 2
      %s25 = sadd.s32 1, %s20
      %p26 = scmp.ge.s32.totalorder %s25, 1
      %s27 = scalar_select %p26, 0, %s25
      %s28 = sadd.s32 1, %s19
      %s29 = scalar_select %p26, %s28, %s19
      %p30 = scmp.ge.s32.totalorder %s29, 2
      %s31 = scalar_select %p30, 0, %s29
      %s32 = ssub.s32 %s19, %s31
      %p33 = scmp.eq.s32.totalorder %s32, 0
      %s35 = sadd.s32 %s34, 1
      %s36 = scalar_select %p33, %s34, %s35
      %p39 = pneg %p33
      %p40 = scmp.eq.s32.totalorder %s12, 1
      %p41 = por %p39, %p40
      %p42 = scmp.ne.s32.totalorder %s34, %s37
      %p43 = scmp.eq.s32.totalorder %s12, 0
      %p44 = por %p42, %p43
      %p45 = scmp.ne.s32.totalorder %s34, %s37
      %p46 = scmp.eq.s32.totalorder %s17, 1
      %p47 = por %p45, %p46
      %p48 = scmp.ne.s32.totalorder %s37, %s38
      %p49 = scmp.eq.s32.totalorder %s17, 0
      %p50 = por %p48, %p49
      %p51 = scmp.ne.s32.totalorder %s37, %s38
      %p52 = scmp.eq.s32.totalorder %s18, 1
      %p53 = por %p51, %p52
      %p55 = scmp.ne.s32.totalorder %s38, %s54
      %p56 = scmp.eq.s32.totalorder %s18, 0
      %p57 = por %p55, %p56
      %s58 = ssub.s32 %s20, %s27
      %p59 = scmp.eq.s32.totalorder %s58, 0
      %s61 = sadd.s32 %s60, 1
      %s62 = scalar_select %p59, %s60, %s61
      %p65 = pneg %p59
      %p66 = scmp.eq.s32.totalorder %s12, 1
      %p67 = por %p65, %p66
      %p68 = scmp.ne.s32.totalorder %s60, %s63
      %p69 = scmp.eq.s32.totalorder %s12, 0
      %p70 = por %p68, %p69
      %p71 = scmp.ne.s32.totalorder %s60, %s63
      %p72 = scmp.eq.s32.totalorder %s17, 1
      %p73 = por %p71, %p72
      %p74 = scmp.ne.s32.totalorder %s63, %s64
      %p75 = scmp.eq.s32.totalorder %s17, 0
      %p76 = por %p74, %p75
      %p77 = scmp.ne.s32.totalorder %s63, %s64
      %p78 = scmp.eq.s32.totalorder %s18, 1
      %p79 = por %p77, %p78
      %p81 = scmp.ne.s32.totalorder %s64, %s80
      %p82 = scmp.eq.s32.totalorder %s18, 0
      %p83 = por %p81, %p82
      %s84 = ssub.s32 %s20, %s27
      %p85 = scmp.eq.s32.totalorder %s84, 0
      %s87 = sadd.s32 %s86, 1
      %s88 = scalar_select %p85, %s86, %s87
      %p91 = pneg %p85
      %p92 = scmp.eq.s32.totalorder %s12, 1
      %p93 = por %p91, %p92
      %p94 = scmp.ne.s32.totalorder %s86, %s89
      %p95 = scmp.eq.s32.totalorder %s12, 0
      %p96 = por %p94, %p95
      %p97 = scmp.ne.s32.totalorder %s86, %s89
      %p98 = scmp.eq.s32.totalorder %s17, 1
      %p99 = por %p97, %p98
      %p100 = scmp.ne.s32.totalorder %s89, %s90
      %p101 = scmp.eq.s32.totalorder %s17, 0
      %p102 = por %p100, %p101
      %p103 = scmp.ne.s32.totalorder %s89, %s90
      %p104 = scmp.eq.s32.totalorder %s18, 1
      %p105 = por %p103, %p104
      %p107 = scmp.ne.s32.totalorder %s90, %s106
      %p108 = scmp.eq.s32.totalorder %s18, 0
      %p109 = por %p107, %p108
      %s110 = ssub.s32 %s19, %s31
      %s111 = ssub.s32 %s20, %s27
      %s112 = sor.u32 %s110, %s111
      %p113 = scmp.eq.s32.totalorder %s112, 0
      %s115 = sadd.s32 %s114, 1
      %s116 = scalar_select %p113, %s114, %s115
      %p119 = pneg %p113
      %p120 = scmp.eq.s32.totalorder %s12, 1
      %p121 = por %p119, %p120
      %p122 = scmp.ne.s32.totalorder %s114, %s117
      %p123 = scmp.eq.s32.totalorder %s12, 0
      %p124 = por %p122, %p123
      %p125 = scmp.ne.s32.totalorder %s114, %s117
      %p126 = scmp.eq.s32.totalorder %s17, 1
      %p127 = por %p125, %p126
      %p128 = scmp.ne.s32.totalorder %s117, %s118
      %p129 = scmp.eq.s32.totalorder %s17, 0
      %p130 = por %p128, %p129
      %p131 = scmp.ne.s32.totalorder %s117, %s118
      %p132 = scmp.eq.s32.totalorder %s18, 1
      %p133 = por %p131, %p132
      %p135 = scmp.ne.s32.totalorder %s118, %s134
      %p136 = scmp.eq.s32.totalorder %s18, 0
      %p137 = por %p135, %p136
      %p138 = scmp.le.s32.totalorder 1, %s12
      %p139 = scmp.lt.s32.totalorder %s12, 3
      %p140 = pnand %p138, %p139
      %p141 = pneg %p140
      // Predicated region
      $region9: #{tpu_custom_call.1} parent=5 // pred_check
        _
      $region10: #{tpu_custom_call.1} parent=5 // pred_check_branch
        %143 = sbr.rel (%p140) target = $region12
      $region11: #{tpu_custom_call.1} parent=5 // pred_region
        %s144 = ssub.s32 %s12, 1
        // Predicated region
        $region13: #{tpu_custom_call.1} parent=11 // pred_check
          %p145 = pneg %p76
        $region14: #{tpu_custom_call.1} parent=11 // pred_check_branch
          %147 = sbr.rel (%p145) target = $region16
        $region15: #{tpu_custom_call.1} parent=11 // pred_region
          %p148 = scmp.lt.s32.totalorder %s22, 0
          %s149 = scalar_select %p148, %s22, 0
          %s150 = smul.addr %s149, 2
          %s151 = scalar_lea.vmem %s1, %s150
        $region16: #{tpu_custom_call.1} parent=11 // pred_fallthru
          _
        // Predicated region
        $region17: #{tpu_custom_call.1} parent=11 // pred_check
          %p152 = pneg %p102
        $region18: #{tpu_custom_call.1} parent=11 // pred_check_branch
          %154 = sbr.rel (%p152) target = $region20
        $region19: #{tpu_custom_call.1} parent=11 // pred_region
          %p155 = scmp.lt.s32.totalorder %s22, 0
          %s156 = scalar_select %p155, %s22, 0
          %s157 = scalar_lea.vmem %s2, %s156
        $region20: #{tpu_custom_call.1} parent=11 // pred_fallthru
          _
      $region12: #{tpu_custom_call.1} parent=5 // pred_fallthru
        _
      %p158 = scmp.lt.s32.totalorder %s12, 2
      // Predicated region
      $region21: #{tpu_custom_call.1} parent=5 // pred_check
        %p159 = pneg %p158
      $region22: #{tpu_custom_call.1} parent=5 // pred_check_branch
        %161 = sbr.rel (%p159) target = $region24
      $region23: #{tpu_custom_call.1} parent=5 // pred_region
        // Predicated region
        $region25: #{tpu_custom_call.1} parent=23 // pred_check
          %p162 = pneg %p44
        $region26: #{tpu_custom_call.1} parent=23 // pred_check_branch
          %164 = sbr.rel (%p162) target = $region28
        $region27: #{tpu_custom_call.1} parent=23 // pred_region
          %p165 = scmp.lt.s32.totalorder %s19, 1
          %s166 = scalar_select %p165, %s19, 1
          %s167 = smul.addr %s166, 72
          %s168 = smul.addr %s167, 4
          %s169 = scalar_lea.vmem %s0, %s168
        $region28: #{tpu_custom_call.1} parent=23 // pred_fallthru
          _
      $region24: #{tpu_custom_call.1} parent=5 // pred_fallthru
        _
      %p170 = scmp.le.s32.totalorder 1, %s12
      %p171 = scmp.lt.s32.totalorder %s12, 3
      %p172 = pnand %p170, %p171
      %p173 = pneg %p172
      // Predicated region
      $region29: #{tpu_custom_call.1} parent=5 // pred_check
        _
      $region30: #{tpu_custom_call.1} parent=5 // pred_check_branch
        %175 = sbr.rel (%p172) target = $region32
      $region31: #{tpu_custom_call.1} parent=5 // pred_region
        %s176 = ssub.s32 %s12, 1
        %p177 = scmp.lt.s32.totalorder %s21, 1
        %s178 = scalar_select %p177, %s21, 1
        %s179 = smul.addr %s178, 72
        %s180 = smul.addr %s179, 4
        %s181 = scalar_lea.vmem %s0, %s180
        %p182 = pneg %p50
        %p183 = pneg %p47
        %p184 = scmp.lt.s32.totalorder %s22, 0
        %s185 = scalar_select %p184, %s22, 0
        %s186 = smul.addr %s185, 2
        %s187 = scalar_lea.vmem %s1, %s186
        %p188 = pneg %p76
        %p189 = pneg %p73
        %p190 = scmp.lt.s32.totalorder %s22, 0
        %s191 = scalar_select %p190, %s22, 0
        %s192 = scalar_lea.vmem %s2, %s191
        %p193 = pneg %p102
        %p194 = pneg %p99
        %p195 = pneg %p130
        %p196 = pneg %p127
        %s197 = sand.u32 %s117, 1
        %s198 = scalar_lea.sflag [#allocation3], %s197
        %s199 = sand.u32 %s117, 1
        %s200 = smul.addr %s199, 64
        %s201 = scalar_lea.vmem [#allocation2], %s200
        %p202 = scmp.lt.s32.totalorder %s21, 1
        %s203 = scalar_select %p202, %s21, 1
        %s204 = smul.addr %s203, 72
        %s205 = smul.addr %s204, 4
        %s206 = scalar_lea.vmem %s0, %s205
        %p207 = scmp.lt.s32.totalorder %s22, 0
        %s208 = scalar_select %p207, %s22, 0
        %s209 = smul.addr %s208, 2
        %s210 = scalar_lea.vmem %s1, %s209
        %p211 = scmp.lt.s32.totalorder %s22, 0
        %s212 = scalar_select %p211, %s22, 0
        %s213 = scalar_lea.vmem %s2, %s212
        %s214 = smul.u32 8, %s21
        %v216 = vld [vmem:[%s206] sm:$0xf]
        %v217 = vld [vmem:[%s206 + $0x8] sm:$0xf]
        %v218 = vld [vmem:[%s206 + $0x10] sm:$0xf]
        %v219 = vld [vmem:[%s206 + $0x18] sm:$0xf]
        %v220 = vld [vmem:[%s206 + $0x20] sm:$0xf]
        %v221 = vld [vmem:[%s206 + $0x28] sm:$0xf]
        %v222 = vld [vmem:[%s206 + $0x30] sm:$0xf]
        %v223 = vld [vmem:[%s206 + $0x38] sm:$0xf]
        %v224 = vld [vmem:[%s210] sm:$0x3]
        %s225 = scalar_lea.vmem %s206, 72
        %v226 = vld [vmem:[%s225] sm:$0xf]
        %v227 = vld [vmem:[%s225 + $0x8] sm:$0xf]
        %v228 = vld [vmem:[%s225 + $0x10] sm:$0xf]
        %v229 = vld [vmem:[%s225 + $0x18] sm:$0xf]
        %v230 = vld [vmem:[%s225 + $0x20] sm:$0xf]
        %v231 = vld [vmem:[%s225 + $0x28] sm:$0xf]
        %v232 = vld [vmem:[%s225 + $0x30] sm:$0xf]
        %v233 = vld [vmem:[%s225 + $0x38] sm:$0xf]
        %s234 = scalar_lea.vmem %s210, 2
        %v235 = vld [vmem:[%s234] sm:$0x3]
        %v244 = vunpack.c.l.b16 %v226
        %v245 = vunpack.c.l.b16 %v227
        %v246 = vunpack.c.l.b16 %v228
        %v247 = vunpack.c.l.b16 %v229
        %v248 = vunpack.c.l.b16 %v230
        %v249 = vunpack.c.l.b16 %v231
        %v250 = vunpack.c.l.b16 %v232
        %v251 = vunpack.c.l.b16 %v233
        %v252 = vpack.c.b16 %v245, %v244
        %v253 = vpack.c.b16 %v247, %v246
        %v254 = vpack.c.b16 %v249, %v248
        %v255 = vpack.c.b16 %v251, %v250
        %vm256 = vcmask 31744
        %v258 = vsel %vm256, %v252, 0
        %v261 = vsel %vm256, %v253, 0
        %v264 = vsel %vm256, %v254, 0
        %v267 = vsel %vm256, %v255, 0
        %vm269 = vcmask 1041408
        %v271 = vsel %vm269, %v235, 0
        %273 = vmatprep.subr.bf16.mxu0 0
        %274 = vmatpush1.bf16.msra.mxu0 %v271
        %275 = vmatprep.subr.bf16.mxu0 0
        %276 = vmatpush1.bf16.msra.mxu0 0
        %277 = vmatprep.subr.bf16.mxu0 0
        %278 = vmatpush1.bf16.msra.mxu0 0
        %279 = vmatprep.subr.bf16.mxu0 0
        %280 = vmatpush1.bf16.msra.mxu0 0
        %281 = vmatprep.subr.bf16.mxu0 0
        %282 = vmatpush1.bf16.msra.mxu0 0
        %283 = vmatprep.subr.bf16.mxu0 0
        %284 = vmatpush1.bf16.msra.mxu0 0
        %285 = vmatprep.subr.bf16.mxu0 0
        %286 = vmatpush1.bf16.msra.mxu0 0
        %287 = vmatprep.subr.bf16.mxu0 0
        %288 = vmatpush1.bf16.msra.mxu0 0
        %289 = vmatprep.subr.bf16.mxu0 0
        %290 = vmatpush1.bf16.msra.mxu0 0
        %291 = vmatprep.subr.bf16.mxu0 0
        %292 = vmatpush1.bf16.msra.mxu0 0
        %293 = vmatprep.subr.bf16.mxu0 0
        %294 = vmatpush1.bf16.msra.mxu0 0
        %295 = vmatprep.subr.bf16.mxu0 0
        %296 = vmatpush1.bf16.msra.mxu0 0
        %297 = vmatprep.subr.bf16.mxu0 0
        %298 = vmatpush1.bf16.msra.mxu0 0
        %299 = vmatprep.subr.bf16.mxu0 0
        %300 = vmatpush1.bf16.msra.mxu0 0
        %301 = vmatprep.subr.bf16.mxu0 0
        %302 = vmatpush1.bf16.msra.mxu0 0
        %303 = vmatprep.subr.bf16.mxu0 0
        %304 = vmatpush1.bf16.msra.mxu0 0
        %305 = vmatprep.mubr.bf16.mxu0 0
        %306 = vmatmul.mubr.bf16.gmra.mrb[0].mxu0 %v258
        %v307 = vpop.f32.mrb[0].mxu0
        %v308 = vadd.f32 0.0, %v307
        %v309 = vpop.f32.mrb[0].mxu0
        %v310 = vpop.f32.mrb[0].mxu0
        %v311 = vadd.f32 0.0, %v310
        %v312 = vpop.f32.mrb[0].mxu0
        %313 = vmatprep.mubr.bf16.mxu0 0
        %314 = vmatmul.mubr.bf16.gmra.mrb[0].mxu0 %v261
        %v315 = vpop.f32.mrb[0].mxu0
        %v316 = vadd.f32 0.0, %v315
        %v317 = vpop.f32.mrb[0].mxu0
        %v318 = vpop.f32.mrb[0].mxu0
        %v319 = vadd.f32 0.0, %v318
        %v320 = vpop.f32.mrb[0].mxu0
        %321 = vmatprep.mubr.bf16.mxu0 0
        %322 = vmatmul.mubr.bf16.gmra.mrb[0].mxu0 %v264
        %v323 = vpop.f32.mrb[0].mxu0
        %v324 = vadd.f32 0.0, %v323
        %v325 = vpop.f32.mrb[0].mxu0
        %v326 = vpop.f32.mrb[0].mxu0
        %v327 = vadd.f32 0.0, %v326
        %v328 = vpop.f32.mrb[0].mxu0
        %329 = vmatprep.mubr.bf16.mxu0 0
        %330 = vmatmul.mubr.bf16.gmra.mrb[0].mxu0 %v267
        %v331 = vpop.f32.mrb[0].mxu0
        %v332 = vadd.f32 0.0, %v331
        %v333 = vpop.f32.mrb[0].mxu0
        %v334 = vpop.f32.mrb[0].mxu0
        %v335 = vadd.f32 0.0, %v334
        %v336 = vpop.f32.mrb[0].mxu0
        %337 = vdwg.mxu0
        %v346 = vunpack.c.l.b16 %v216
        %v347 = vunpack.c.l.b16 %v217
        %v348 = vunpack.c.l.b16 %v218
        %v349 = vunpack.c.l.b16 %v219
        %v350 = vunpack.c.l.b16 %v220
        %v351 = vunpack.c.l.b16 %v221
        %v352 = vunpack.c.l.b16 %v222
        %v353 = vunpack.c.l.b16 %v223
        %v354 = vpack.c.b16 %v347, %v346
        %v355 = vpack.c.b16 %v349, %v348
        %v356 = vpack.c.b16 %v351, %v350
        %v357 = vpack.c.b16 %v353, %v352
        %v359 = vsel %vm256, %v354, 0
        %v362 = vsel %vm256, %v355, 0
        %v365 = vsel %vm256, %v356, 0
        %v368 = vsel %vm256, %v357, 0
        %v371 = vsel %vm269, %v224, 0
        %373 = vmatprep.subr.bf16.mxu0 0
        %374 = vmatpush1.bf16.msra.mxu0 %v371
        %375 = vmatprep.subr.bf16.mxu0 0
        %376 = vmatpush1.bf16.msra.mxu0 0
        %377 = vmatprep.subr.bf16.mxu0 0
        %378 = vmatpush1.bf16.msra.mxu0 0
        %379 = vmatprep.subr.bf16.mxu0 0
        %380 = vmatpush1.bf16.msra.mxu0 0
        %381 = vmatprep.subr.bf16.mxu0 0
        %382 = vmatpush1.bf16.msra.mxu0 0
        %383 = vmatprep.subr.bf16.mxu0 0
        %384 = vmatpush1.bf16.msra.mxu0 0
        %385 = vmatprep.subr.bf16.mxu0 0
        %386 = vmatpush1.bf16.msra.mxu0 0
        %387 = vmatprep.subr.bf16.mxu0 0
        %388 = vmatpush1.bf16.msra.mxu0 0
        %389 = vmatprep.subr.bf16.mxu0 0
        %390 = vmatpush1.bf16.msra.mxu0 0
        %391 = vmatprep.subr.bf16.mxu0 0
        %392 = vmatpush1.bf16.msra.mxu0 0
        %393 = vmatprep.subr.bf16.mxu0 0
        %394 = vmatpush1.bf16.msra.mxu0 0
        %395 = vmatprep.subr.bf16.mxu0 0
        %396 = vmatpush1.bf16.msra.mxu0 0
        %397 = vmatprep.subr.bf16.mxu0 0
        %398 = vmatpush1.bf16.msra.mxu0 0
        %399 = vmatprep.subr.bf16.mxu0 0
        %400 = vmatpush1.bf16.msra.mxu0 0
        %401 = vmatprep.subr.bf16.mxu0 0
        %402 = vmatpush1.bf16.msra.mxu0 0
        %403 = vmatprep.subr.bf16.mxu0 0
        %404 = vmatpush1.bf16.msra.mxu0 0
        %405 = vmatprep.mubr.bf16.mxu0 0
        %406 = vmatmul.mubr.bf16.gmra.mrb[0].mxu0 %v359
        %v407 = vpop.f32.mrb[0].mxu0
        %v408 = vadd.f32 %v308, %v407
        %v409 = vpop.f32.mrb[0].mxu0
        %v410 = vpop.f32.mrb[0].mxu0
        %v411 = vadd.f32 %v311, %v410
        %v412 = vpop.f32.mrb[0].mxu0
        %413 = vmatprep.mubr.bf16.mxu0 0
        %414 = vmatmul.mubr.bf16.gmra.mrb[0].mxu0 %v362
        %v415 = vpop.f32.mrb[0].mxu0
        %v416 = vadd.f32 %v316, %v415
        %v417 = vpop.f32.mrb[0].mxu0
        %v418 = vpop.f32.mrb[0].mxu0
        %v419 = vadd.f32 %v319, %v418
        %v420 = vpop.f32.mrb[0].mxu0
        %421 = vmatprep.mubr.bf16.mxu0 0
        %422 = vmatmul.mubr.bf16.gmra.mrb[0].mxu0 %v365
        %v423 = vpop.f32.mrb[0].mxu0
        %v424 = vadd.f32 %v324, %v423
        %v425 = vpop.f32.mrb[0].mxu0
        %v426 = vpop.f32.mrb[0].mxu0
        %v427 = vadd.f32 %v327, %v426
        %v428 = vpop.f32.mrb[0].mxu0
        %429 = vmatprep.mubr.bf16.mxu0 0
        %430 = vmatmul.mubr.bf16.gmra.mrb[0].mxu0 %v368
        %v431 = vpop.f32.mrb[0].mxu0
        %v432 = vadd.f32 %v332, %v431
        %v433 = vpop.f32.mrb[0].mxu0
        %v434 = vpop.f32.mrb[0].mxu0
        %v435 = vadd.f32 %v335, %v434
        %v436 = vpop.f32.mrb[0].mxu0
        %437 = vdwg.mxu0
        %v438 = vld [vmem:[%s206] sm:$0xf]
        %v439 = vld [vmem:[%s206 + $0x4] sm:$0x1]
        %v440 = vld [vmem:[%s206 + $0x8] sm:$0xf]
        %v441 = vld [vmem:[%s206 + $0xc] sm:$0x1]
        %v442 = vld [vmem:[%s206 + $0x10] sm:$0xf]
        %v443 = vld [vmem:[%s206 + $0x14] sm:$0x1]
        %v444 = vld [vmem:[%s206 + $0x18] sm:$0xf]
        %v445 = vld [vmem:[%s206 + $0x1c] sm:$0x1]
        %v446 = vld [vmem:[%s206 + $0x20] sm:$0xf]
        %v447 = vld [vmem:[%s206 + $0x24] sm:$0x1]
        %v448 = vld [vmem:[%s206 + $0x28] sm:$0xf]
        %v449 = vld [vmem:[%s206 + $0x2c] sm:$0x1]
        %v450 = vld [vmem:[%s206 + $0x30] sm:$0xf]
        %v451 = vld [vmem:[%s206 + $0x34] sm:$0x1]
        %v452 = vld [vmem:[%s206 + $0x38] sm:$0xf]
        %v453 = vld [vmem:[%s206 + $0x3c] sm:$0x1]
        %vm454 = vsmask.f32 3328
        %vm455 = vsmask.f32 7440
        %vm456 = vmor %vm454, %vm455
        %v458 = vshrl.u32 %v438, 16
        %v460 = vrot.slane %v458, 4
        %v461 = vshll.u32 %v438, 16
        %v463 = vrot.slane %v461, 5
        %v464 = vor.u32 %v460, %v463
        %v465 = vrot.slane %v464, 4
        %v467 = vshll.u32 %v439, 16
        %v469 = vrot.slane %v467, 5
        %v470 = vsel %vm456, %v465, %v469
        %v472 = vshrl.u32 %v440, 16
        %v474 = vrot.slane %v472, 4
        %v475 = vshll.u32 %v440, 16
        %v477 = vrot.slane %v475, 5
        %v478 = vor.u32 %v474, %v477
        %v479 = vrot.slane %v478, 4
        %v481 = vshll.u32 %v441, 16
        %v483 = vrot.slane %v481, 5
        %v484 = vsel %vm456, %v479, %v483
        %v486 = vshrl.u32 %v442, 16
        %v488 = vrot.slane %v486, 4
        %v489 = vshll.u32 %v442, 16
        %v491 = vrot.slane %v489, 5
        %v492 = vor.u32 %v488, %v491
        %v493 = vrot.slane %v492, 4
        %v495 = vshll.u32 %v443, 16
        %v497 = vrot.slane %v495, 5
        %v498 = vsel %vm456, %v493, %v497
        %v500 = vshrl.u32 %v444, 16
        %v502 = vrot.slane %v500, 4
        %v503 = vshll.u32 %v444, 16
        %v505 = vrot.slane %v503, 5
        %v506 = vor.u32 %v502, %v505
        %v507 = vrot.slane %v506, 4
        %v509 = vshll.u32 %v445, 16
        %v511 = vrot.slane %v509, 5
        %v512 = vsel %vm456, %v507, %v511
        %v514 = vshrl.u32 %v446, 16
        %v516 = vrot.slane %v514, 4
        %v517 = vshll.u32 %v446, 16
        %v519 = vrot.slane %v517, 5
        %v520 = vor.u32 %v516, %v519
        %v521 = vrot.slane %v520, 4
        %v523 = vshll.u32 %v447, 16
        %v525 = vrot.slane %v523, 5
        %v526 = vsel %vm456, %v521, %v525
        %v528 = vshrl.u32 %v448, 16
        %v530 = vrot.slane %v528, 4
        %v531 = vshll.u32 %v448, 16
        %v533 = vrot.slane %v531, 5
        %v534 = vor.u32 %v530, %v533
        %v535 = vrot.slane %v534, 4
        %v537 = vshll.u32 %v449, 16
        %v539 = vrot.slane %v537, 5
        %v540 = vsel %vm456, %v535, %v539
        %v542 = vshrl.u32 %v450, 16
        %v544 = vrot.slane %v542, 4
        %v545 = vshll.u32 %v450, 16
        %v547 = vrot.slane %v545, 5
        %v548 = vor.u32 %v544, %v547
        %v549 = vrot.slane %v548, 4
        %v551 = vshll.u32 %v451, 16
        %v553 = vrot.slane %v551, 5
        %v554 = vsel %vm456, %v549, %v553
        %v556 = vshrl.u32 %v452, 16
        %v558 = vrot.slane %v556, 4
        %v559 = vshll.u32 %v452, 16
        %v561 = vrot.slane %v559, 5
        %v562 = vor.u32 %v558, %v561
        %v563 = vrot.slane %v562, 4
        %v565 = vshll.u32 %v453, 16
        %v567 = vrot.slane %v565, 5
        %v568 = vsel %vm456, %v563, %v567
        %s569 = scalar_lea.vmem %s210, 4
        %v570 = vld [vmem:[%s569] sm:$0x3]
        %v571 = vunpack.c.l.b16 %v470
        %v572 = vunpack.c.l.b16 %v484
        %v573 = vunpack.c.l.b16 %v498
        %v574 = vunpack.c.l.b16 %v512
        %v575 = vunpack.c.l.b16 %v526
        %v576 = vunpack.c.l.b16 %v540
        %v577 = vunpack.c.l.b16 %v554
        %v578 = vunpack.c.l.b16 %v568
        %v579 = vpack.c.b16 %v572, %v571
        %v580 = vpack.c.b16 %v574, %v573
        %v581 = vpack.c.b16 %v576, %v575
        %v582 = vpack.c.b16 %v578, %v577
        %v584 = vsel %vm256, %v579, 0
        %v587 = vsel %vm256, %v580, 0
        %v590 = vsel %vm256, %v581, 0
        %v593 = vsel %vm256, %v582, 0
        %v596 = vsel %vm269, %v570, 0
        %598 = vmatprep.subr.bf16.mxu0 0
        %599 = vmatpush1.bf16.msra.mxu0 %v596
        %600 = vmatprep.subr.bf16.mxu0 0
        %601 = vmatpush1.bf16.msra.mxu0 0
        %602 = vmatprep.subr.bf16.mxu0 0
        %603 = vmatpush1.bf16.msra.mxu0 0
        %604 = vmatprep.subr.bf16.mxu0 0
        %605 = vmatpush1.bf16.msra.mxu0 0
        %606 = vmatprep.subr.bf16.mxu0 0
        %607 = vmatpush1.bf16.msra.mxu0 0
        %608 = vmatprep.subr.bf16.mxu0 0
        %609 = vmatpush1.bf16.msra.mxu0 0
        %610 = vmatprep.subr.bf16.mxu0 0
        %611 = vmatpush1.bf16.msra.mxu0 0
        %612 = vmatprep.subr.bf16.mxu0 0
        %613 = vmatpush1.bf16.msra.mxu0 0
        %614 = vmatprep.subr.bf16.mxu0 0
        %615 = vmatpush1.bf16.msra.mxu0 0
        %616 = vmatprep.subr.bf16.mxu0 0
        %617 = vmatpush1.bf16.msra.mxu0 0
        %618 = vmatprep.subr.bf16.mxu0 0
        %619 = vmatpush1.bf16.msra.mxu0 0
        %620 = vmatprep.subr.bf16.mxu0 0
        %621 = vmatpush1.bf16.msra.mxu0 0
        %622 = vmatprep.subr.bf16.mxu0 0
        %623 = vmatpush1.bf16.msra.mxu0 0
        %624 = vmatprep.subr.bf16.mxu0 0
        %625 = vmatpush1.bf16.msra.mxu0 0
        %626 = vmatprep.subr.bf16.mxu0 0
        %627 = vmatpush1.bf16.msra.mxu0 0
        %628 = vmatprep.subr.bf16.mxu0 0
        %629 = vmatpush1.bf16.msra.mxu0 0
        %630 = vmatprep.mubr.bf16.mxu0 0
        %631 = vmatmul.mubr.bf16.gmra.mrb[0].mxu0 %v584
        %v632 = vpop.f32.mrb[0].mxu0
        %v633 = vadd.f32 0.0, %v632
        %v634 = vpop.f32.mrb[0].mxu0
        %v635 = vpop.f32.mrb[0].mxu0
        %v636 = vadd.f32 0.0, %v635
        %v637 = vpop.f32.mrb[0].mxu0
        %638 = vmatprep.mubr.bf16.mxu0 0
        %639 = vmatmul.mubr.bf16.gmra.mrb[0].mxu0 %v587
        %v640 = vpop.f32.mrb[0].mxu0
        %v641 = vadd.f32 0.0, %v640
        %v642 = vpop.f32.mrb[0].mxu0
        %v643 = vpop.f32.mrb[0].mxu0
        %v644 = vadd.f32 0.0, %v643
        %v645 = vpop.f32.mrb[0].mxu0
        %646 = vmatprep.mubr.bf16.mxu0 0
        %647 = vmatmul.mubr.bf16.gmra.mrb[0].mxu0 %v590
        %v648 = vpop.f32.mrb[0].mxu0
        %v649 = vadd.f32 0.0, %v648
        %v650 = vpop.f32.mrb[0].mxu0
        %v651 = vpop.f32.mrb[0].mxu0
        %v652 = vadd.f32 0.0, %v651
        %v653 = vpop.f32.mrb[0].mxu0
        %654 = vmatprep.mubr.bf16.mxu0 0
        %655 = vmatmul.mubr.bf16.gmra.mrb[0].mxu0 %v593
        %v656 = vpop.f32.mrb[0].mxu0
        %v657 = vadd.f32 0.0, %v656
        %v658 = vpop.f32.mrb[0].mxu0
        %v659 = vpop.f32.mrb[0].mxu0
        %v660 = vadd.f32 0.0, %v659
        %v661 = vpop.f32.mrb[0].mxu0
        %662 = vdwg.mxu0
        %v663 = vadd.f32 %v408, %v633
        %v664 = vadd.f32 %v411, %v636
        %v665 = vadd.f32 %v416, %v641
        %v666 = vadd.f32 %v419, %v644
        %v667 = vadd.f32 %v424, %v649
        %v668 = vadd.f32 %v427, %v652
        %v669 = vadd.f32 %v432, %v657
        %v670 = vadd.f32 %v435, %v660
        %s671 = scalar_lea.vmem %s206, 144
        %v672 = vld [vmem:[%s671] sm:$0xf]
        %v673 = vld [vmem:[%s671 + $0x8] sm:$0xf]
        %v674 = vld [vmem:[%s671 + $0x10] sm:$0xf]
        %v675 = vld [vmem:[%s671 + $0x18] sm:$0xf]
        %v676 = vld [vmem:[%s671 + $0x20] sm:$0xf]
        %v677 = vld [vmem:[%s671 + $0x28] sm:$0xf]
        %v678 = vld [vmem:[%s671 + $0x30] sm:$0xf]
        %v679 = vld [vmem:[%s671 + $0x38] sm:$0xf]
        %s680 = scalar_lea.vmem %s210, 6
        %v681 = vld [vmem:[%s680] sm:$0x3]
        %v690 = vunpack.c.l.b16 %v672
        %v691 = vunpack.c.l.b16 %v673
        %v692 = vunpack.c.l.b16 %v674
        %v693 = vunpack.c.l.b16 %v675
        %v694 = vunpack.c.l.b16 %v676
        %v695 = vunpack.c.l.b16 %v677
        %v696 = vunpack.c.l.b16 %v678
        %v697 = vunpack.c.l.b16 %v679
        %v698 = vpack.c.b16 %v691, %v690
        %v699 = vpack.c.b16 %v693, %v692
        %v700 = vpack.c.b16 %v695, %v694
        %v701 = vpack.c.b16 %v697, %v696
        %v703 = vsel %vm256, %v698, 0
        %v706 = vsel %vm256, %v699, 0
        %v709 = vsel %vm256, %v700, 0
        %v712 = vsel %vm256, %v701, 0
        %v715 = vsel %vm269, %v681, 0
        %717 = vmatprep.subr.bf16.mxu0 0
        %718 = vmatpush1.bf16.msra.mxu0 %v715
        %719 = vmatprep.subr.bf16.mxu0 0
        %720 = vmatpush1.bf16.msra.mxu0 0
        %721 = vmatprep.subr.bf16.mxu0 0
        %722 = vmatpush1.bf16.msra.mxu0 0
        %723 = vmatprep.subr.bf16.mxu0 0
        %724 = vmatpush1.bf16.msra.mxu0 0
        %725 = vmatprep.subr.bf16.mxu0 0
        %726 = vmatpush1.bf16.msra.mxu0 0
        %727 = vmatprep.subr.bf16.mxu0 0
        %728 = vmatpush1.bf16.msra.mxu0 0
        %729 = vmatprep.subr.bf16.mxu0 0
        %730 = vmatpush1.bf16.msra.mxu0 0
        %731 = vmatprep.subr.bf16.mxu0 0
        %732 = vmatpush1.bf16.msra.mxu0 0
        %733 = vmatprep.subr.bf16.mxu0 0
        %734 = vmatpush1.bf16.msra.mxu0 0
        %735 = vmatprep.subr.bf16.mxu0 0
        %736 = vmatpush1.bf16.msra.mxu0 0
        %737 = vmatprep.subr.bf16.mxu0 0
        %738 = vmatpush1.bf16.msra.mxu0 0
        %739 = vmatprep.subr.bf16.mxu0 0
        %740 = vmatpush1.bf16.msra.mxu0 0
        %741 = vmatprep.subr.bf16.mxu0 0
        %742 = vmatpush1.bf16.msra.mxu0 0
        %743 = vmatprep.subr.bf16.mxu0 0
        %744 = vmatpush1.bf16.msra.mxu0 0
        %745 = vmatprep.subr.bf16.mxu0 0
        %746 = vmatpush1.bf16.msra.mxu0 0
        %747 = vmatprep.subr.bf16.mxu0 0
        %748 = vmatpush1.bf16.msra.mxu0 0
        %749 = vmatprep.mubr.bf16.mxu0 0
        %750 = vmatmul.mubr.bf16.gmra.mrb[0].mxu0 %v703
        %v751 = vpop.f32.mrb[0].mxu0
        %v752 = vadd.f32 0.0, %v751
        %v753 = vpop.f32.mrb[0].mxu0
        %v754 = vpop.f32.mrb[0].mxu0
        %v755 = vadd.f32 0.0, %v754
        %v756 = vpop.f32.mrb[0].mxu0
        %757 = vmatprep.mubr.bf16.mxu0 0
        %758 = vmatmul.mubr.bf16.gmra.mrb[0].mxu0 %v706
        %v759 = vpop.f32.mrb[0].mxu0
        %v760 = vadd.f32 0.0, %v759
        %v761 = vpop.f32.mrb[0].mxu0
        %v762 = vpop.f32.mrb[0].mxu0
        %v763 = vadd.f32 0.0, %v762
        %v764 = vpop.f32.mrb[0].mxu0
        %765 = vmatprep.mubr.bf16.mxu0 0
        %766 = vmatmul.mubr.bf16.gmra.mrb[0].mxu0 %v709
        %v767 = vpop.f32.mrb[0].mxu0
        %v768 = vadd.f32 0.0, %v767
        %v769 = vpop.f32.mrb[0].mxu0
        %v770 = vpop.f32.mrb[0].mxu0
        %v771 = vadd.f32 0.0, %v770
        %v772 = vpop.f32.mrb[0].mxu0
        %773 = vmatprep.mubr.bf16.mxu0 0
        %774 = vmatmul.mubr.bf16.gmra.mrb[0].mxu0 %v712
        %v775 = vpop.f32.mrb[0].mxu0
        %v776 = vadd.f32 0.0, %v775
        %v777 = vpop.f32.mrb[0].mxu0
        %v778 = vpop.f32.mrb[0].mxu0
        %v779 = vadd.f32 0.0, %v778
        %v780 = vpop.f32.mrb[0].mxu0
        %781 = vdwg.mxu0
        %v782 = vadd.f32 %v663, %v752
        %v783 = vadd.f32 %v664, %v755
        %v784 = vadd.f32 %v665, %v760
        %v785 = vadd.f32 %v666, %v763
        %v786 = vadd.f32 %v667, %v768
        %v787 = vadd.f32 %v668, %v771
        %v788 = vadd.f32 %v669, %v776
        %v789 = vadd.f32 %v670, %v779
        %s790 = scalar_lea.vmem %s206, 216
        %v791 = vld [vmem:[%s790] sm:$0xf]
        %v792 = vld [vmem:[%s790 + $0x8] sm:$0xf]
        %v793 = vld [vmem:[%s790 + $0x10] sm:$0xf]
        %v794 = vld [vmem:[%s790 + $0x18] sm:$0xf]
        %v795 = vld [vmem:[%s790 + $0x20] sm:$0xf]
        %v796 = vld [vmem:[%s790 + $0x28] sm:$0xf]
        %v797 = vld [vmem:[%s790 + $0x30] sm:$0xf]
        %v798 = vld [vmem:[%s790 + $0x38] sm:$0xf]
        %s799 = scalar_lea.vmem %s210, 8
        %v800 = vld [vmem:[%s799] sm:$0x3]
        %v809 = vunpack.c.l.b16 %v791
        %v810 = vunpack.c.l.b16 %v792
        %v811 = vunpack.c.l.b16 %v793
        %v812 = vunpack.c.l.b16 %v794
        %v813 = vunpack.c.l.b16 %v795
        %v814 = vunpack.c.l.b16 %v796
        %v815 = vunpack.c.l.b16 %v797
        %v816 = vunpack.c.l.b16 %v798
        %v817 = vpack.c.b16 %v810, %v809
        %v818 = vpack.c.b16 %v812, %v811
        %v819 = vpack.c.b16 %v814, %v813
        %v820 = vpack.c.b16 %v816, %v815
        %v822 = vsel %vm256, %v817, 0
        %v825 = vsel %vm256, %v818, 0
        %v828 = vsel %vm256, %v819, 0
        %v831 = vsel %vm256, %v820, 0
        %v834 = vsel %vm269, %v800, 0
        %836 = vmatprep.subr.bf16.mxu0 0
        %837 = vmatpush1.bf16.msra.mxu0 %v834
        %838 = vmatprep.subr.bf16.mxu0 0
        %839 = vmatpush1.bf16.msra.mxu0 0
        %840 = vmatprep.subr.bf16.mxu0 0
        %841 = vmatpush1.bf16.msra.mxu0 0
        %842 = vmatprep.subr.bf16.mxu0 0
        %843 = vmatpush1.bf16.msra.mxu0 0
        %844 = vmatprep.subr.bf16.mxu0 0
        %845 = vmatpush1.bf16.msra.mxu0 0
        %846 = vmatprep.subr.bf16.mxu0 0
        %847 = vmatpush1.bf16.msra.mxu0 0
        %848 = vmatprep.subr.bf16.mxu0 0
        %849 = vmatpush1.bf16.msra.mxu0 0
        %850 = vmatprep.subr.bf16.mxu0 0
        %851 = vmatpush1.bf16.msra.mxu0 0
        %852 = vmatprep.subr.bf16.mxu0 0
        %853 = vmatpush1.bf16.msra.mxu0 0
        %854 = vmatprep.subr.bf16.mxu0 0
        %855 = vmatpush1.bf16.msra.mxu0 0
        %856 = vmatprep.subr.bf16.mxu0 0
        %857 = vmatpush1.bf16.msra.mxu0 0
        %858 = vmatprep.subr.bf16.mxu0 0
        %859 = vmatpush1.bf16.msra.mxu0 0
        %860 = vmatprep.subr.bf16.mxu0 0
        %861 = vmatpush1.bf16.msra.mxu0 0
        %862 = vmatprep.subr.bf16.mxu0 0
        %863 = vmatpush1.bf16.msra.mxu0 0
        %864 = vmatprep.subr.bf16.mxu0 0
        %865 = vmatpush1.bf16.msra.mxu0 0
        %866 = vmatprep.subr.bf16.mxu0 0
        %867 = vmatpush1.bf16.msra.mxu0 0
        %868 = vmatprep.mubr.bf16.mxu0 0
        %869 = vmatmul.mubr.bf16.gmra.mrb[0].mxu0 %v822
        %v870 = vpop.f32.mrb[0].mxu0
        %v871 = vadd.f32 0.0, %v870
        %v872 = vpop.f32.mrb[0].mxu0
        %v873 = vpop.f32.mrb[0].mxu0
        %v874 = vadd.f32 0.0, %v873
        %v875 = vpop.f32.mrb[0].mxu0
        %876 = vmatprep.mubr.bf16.mxu0 0
        %877 = vmatmul.mubr.bf16.gmra.mrb[0].mxu0 %v825
        %v878 = vpop.f32.mrb[0].mxu0
        %v879 = vadd.f32 0.0, %v878
        %v880 = vpop.f32.mrb[0].mxu0
        %v881 = vpop.f32.mrb[0].mxu0
        %v882 = vadd.f32 0.0, %v881
        %v883 = vpop.f32.mrb[0].mxu0
        %884 = vmatprep.mubr.bf16.mxu0 0
        %885 = vmatmul.mubr.bf16.gmra.mrb[0].mxu0 %v828
        %v886 = vpop.f32.mrb[0].mxu0
        %v887 = vadd.f32 0.0, %v886
        %v888 = vpop.f32.mrb[0].mxu0
        %v889 = vpop.f32.mrb[0].mxu0
        %v890 = vadd.f32 0.0, %v889
        %v891 = vpop.f32.mrb[0].mxu0
        %892 = vmatprep.mubr.bf16.mxu0 0
        %893 = vmatmul.mubr.bf16.gmra.mrb[0].mxu0 %v831
        %v894 = vpop.f32.mrb[0].mxu0
        %v895 = vadd.f32 0.0, %v894
        %v896 = vpop.f32.mrb[0].mxu0
        %v897 = vpop.f32.mrb[0].mxu0
        %v898 = vadd.f32 0.0, %v897
        %v899 = vpop.f32.mrb[0].mxu0
        %900 = vdwg.mxu0
        %v901 = vadd.f32 %v782, %v871
        %v902 = vadd.f32 %v783, %v874
        %v903 = vadd.f32 %v784, %v879
        %v904 = vadd.f32 %v785, %v882
        %v905 = vadd.f32 %v786, %v887
        %v906 = vadd.f32 %v787, %v890
        %v907 = vadd.f32 %v788, %v895
        %v908 = vadd.f32 %v789, %v898
        %v909 = vld [vmem:[%s671] sm:$0xf]
        %v910 = vld [vmem:[%s671 + $0x4] sm:$0x1]
        %v911 = vld [vmem:[%s671 + $0x8] sm:$0xf]
        %v912 = vld [vmem:[%s671 + $0xc] sm:$0x1]
        %v913 = vld [vmem:[%s671 + $0x10] sm:$0xf]
        %v914 = vld [vmem:[%s671 + $0x14] sm:$0x1]
        %v915 = vld [vmem:[%s671 + $0x18] sm:$0xf]
        %v916 = vld [vmem:[%s671 + $0x1c] sm:$0x1]
        %v917 = vld [vmem:[%s671 + $0x20] sm:$0xf]
        %v918 = vld [vmem:[%s671 + $0x24] sm:$0x1]
        %v919 = vld [vmem:[%s671 + $0x28] sm:$0xf]
        %v920 = vld [vmem:[%s671 + $0x2c] sm:$0x1]
        %v921 = vld [vmem:[%s671 + $0x30] sm:$0xf]
        %v922 = vld [vmem:[%s671 + $0x34] sm:$0x1]
        %v923 = vld [vmem:[%s671 + $0x38] sm:$0xf]
        %v924 = vld [vmem:[%s671 + $0x3c] sm:$0x1]
        %v926 = vshrl.u32 %v909, 16
        %v928 = vrot.slane %v926, 4
        %v929 = vshll.u32 %v909, 16
        %v931 = vrot.slane %v929, 5
        %v932 = vor.u32 %v928, %v931
        %v933 = vrot.slane %v932, 4
        %v935 = vshll.u32 %v910, 16
        %v937 = vrot.slane %v935, 5
        %v938 = vsel %vm456, %v933, %v937
        %v940 = vshrl.u32 %v911, 16
        %v942 = vrot.slane %v940, 4
        %v943 = vshll.u32 %v911, 16
        %v945 = vrot.slane %v943, 5
        %v946 = vor.u32 %v942, %v945
        %v947 = vrot.slane %v946, 4
        %v949 = vshll.u32 %v912, 16
        %v951 = vrot.slane %v949, 5
        %v952 = vsel %vm456, %v947, %v951
        %v954 = vshrl.u32 %v913, 16
        %v956 = vrot.slane %v954, 4
        %v957 = vshll.u32 %v913, 16
        %v959 = vrot.slane %v957, 5
        %v960 = vor.u32 %v956, %v959
        %v961 = vrot.slane %v960, 4
        %v963 = vshll.u32 %v914, 16
        %v965 = vrot.slane %v963, 5
        %v966 = vsel %vm456, %v961, %v965
        %v968 = vshrl.u32 %v915, 16
        %v970 = vrot.slane %v968, 4
        %v971 = vshll.u32 %v915, 16
        %v973 = vrot.slane %v971, 5
        %v974 = vor.u32 %v970, %v973
        %v975 = vrot.slane %v974, 4
        %v977 = vshll.u32 %v916, 16
        %v979 = vrot.slane %v977, 5
        %v980 = vsel %vm456, %v975, %v979
        %v982 = vshrl.u32 %v917, 16
        %v984 = vrot.slane %v982, 4
        %v985 = vshll.u32 %v917, 16
        %v987 = vrot.slane %v985, 5
        %v988 = vor.u32 %v984, %v987
        %v989 = vrot.slane %v988, 4
        %v991 = vshll.u32 %v918, 16
        %v993 = vrot.slane %v991, 5
        %v994 = vsel %vm456, %v989, %v993
        %v996 = vshrl.u32 %v919, 16
        %v998 = vrot.slane %v996, 4
        %v999 = vshll.u32 %v919, 16
        %v1001 = vrot.slane %v999, 5
        %v1002 = vor.u32 %v998, %v1001
        %v1003 = vrot.slane %v1002, 4
        %v1005 = vshll.u32 %v920, 16
        %v1007 = vrot.slane %v1005, 5
        %v1008 = vsel %vm456, %v1003, %v1007
        %v1010 = vshrl.u32 %v921, 16
        %v1012 = vrot.slane %v1010, 4
        %v1013 = vshll.u32 %v921, 16
        %v1015 = vrot.slane %v1013, 5
        %v1016 = vor.u32 %v1012, %v1015
        %v1017 = vrot.slane %v1016, 4
        %v1019 = vshll.u32 %v922, 16
        %v1021 = vrot.slane %v1019, 5
        %v1022 = vsel %vm456, %v1017, %v1021
        %v1024 = vshrl.u32 %v923, 16
        %v1026 = vrot.slane %v1024, 4
        %v1027 = vshll.u32 %v923, 16
        %v1029 = vrot.slane %v1027, 5
        %v1030 = vor.u32 %v1026, %v1029
        %v1031 = vrot.slane %v1030, 4
        %v1033 = vshll.u32 %v924, 16
        %v1035 = vrot.slane %v1033, 5
        %v1036 = vsel %vm456, %v1031, %v1035
        %s1037 = scalar_lea.vmem %s210, 10
        %v1038 = vld [vmem:[%s1037] sm:$0x3]
        %v1039 = vunpack.c.l.b16 %v938
        %v1040 = vunpack.c.l.b16 %v952
        %v1041 = vunpack.c.l.b16 %v966
        %v1042 = vunpack.c.l.b16 %v980
        %v1043 = vunpack.c.l.b16 %v994
        %v1044 = vunpack.c.l.b16 %v1008
        %v1045 = vunpack.c.l.b16 %v1022
        %v1046 = vunpack.c.l.b16 %v1036
        %v1047 = vpack.c.b16 %v1040, %v1039
        %v1048 = vpack.c.b16 %v1042, %v1041
        %v1049 = vpack.c.b16 %v1044, %v1043
        %v1050 = vpack.c.b16 %v1046, %v1045
        %v1052 = vsel %vm256, %v1047, 0
        %v1055 = vsel %vm256, %v1048, 0
        %v1058 = vsel %vm256, %v1049, 0
        %v1061 = vsel %vm256, %v1050, 0
        %v1064 = vsel %vm269, %v1038, 0
        %1066 = vmatprep.subr.bf16.mxu0 0
        %1067 = vmatpush1.bf16.msra.mxu0 %v1064
        %1068 = vmatprep.subr.bf16.mxu0 0
        %1069 = vmatpush1.bf16.msra.mxu0 0
        %1070 = vmatprep.subr.bf16.mxu0 0
        %1071 = vmatpush1.bf16.msra.mxu0 0
        %1072 = vmatprep.subr.bf16.mxu0 0
        %1073 = vmatpush1.bf16.msra.mxu0 0
        %1074 = vmatprep.subr.bf16.mxu0 0
        %1075 = vmatpush1.bf16.msra.mxu0 0
        %1076 = vmatprep.subr.bf16.mxu0 0
        %1077 = vmatpush1.bf16.msra.mxu0 0
        %1078 = vmatprep.subr.bf16.mxu0 0
        %1079 = vmatpush1.bf16.msra.mxu0 0
        %1080 = vmatprep.subr.bf16.mxu0 0
        %1081 = vmatpush1.bf16.msra.mxu0 0
        %1082 = vmatprep.subr.bf16.mxu0 0
        %1083 = vmatpush1.bf16.msra.mxu0 0
        %1084 = vmatprep.subr.bf16.mxu0 0
        %1085 = vmatpush1.bf16.msra.mxu0 0
        %1086 = vmatprep.subr.bf16.mxu0 0
        %1087 = vmatpush1.bf16.msra.mxu0 0
        %1088 = vmatprep.subr.bf16.mxu0 0
        %1089 = vmatpush1.bf16.msra.mxu0 0
        %1090 = vmatprep.subr.bf16.mxu0 0
        %1091 = vmatpush1.bf16.msra.mxu0 0
        %1092 = vmatprep.subr.bf16.mxu0 0
        %1093 = vmatpush1.bf16.msra.mxu0 0
        %1094 = vmatprep.subr.bf16.mxu0 0
        %1095 = vmatpush1.bf16.msra.mxu0 0
        %1096 = vmatprep.subr.bf16.mxu0 0
        %1097 = vmatpush1.bf16.msra.mxu0 0
        %1098 = vmatprep.mubr.bf16.mxu0 0
        %1099 = vmatmul.mubr.bf16.gmra.mrb[0].mxu0 %v1052
        %v1100 = vpop.f32.mrb[0].mxu0
        %v1101 = vadd.f32 0.0, %v1100
        %v1102 = vpop.f32.mrb[0].mxu0
        %v1103 = vpop.f32.mrb[0].mxu0
        %v1104 = vadd.f32 0.0, %v1103
        %v1105 = vpop.f32.mrb[0].mxu0
        %1106 = vmatprep.mubr.bf16.mxu0 0
        %1107 = vmatmul.mubr.bf16.gmra.mrb[0].mxu0 %v1055
        %v1108 = vpop.f32.mrb[0].mxu0
        %v1109 = vadd.f32 0.0, %v1108
        %v1110 = vpop.f32.mrb[0].mxu0
        %v1111 = vpop.f32.mrb[0].mxu0
        %v1112 = vadd.f32 0.0, %v1111
        %v1113 = vpop.f32.mrb[0].mxu0
        %1114 = vmatprep.mubr.bf16.mxu0 0
        %1115 = vmatmul.mubr.bf16.gmra.mrb[0].mxu0 %v1058
        %v1116 = vpop.f32.mrb[0].mxu0
        %v1117 = vadd.f32 0.0, %v1116
        %v1118 = vpop.f32.mrb[0].mxu0
        %v1119 = vpop.f32.mrb[0].mxu0
        %v1120 = vadd.f32 0.0, %v1119
        %v1121 = vpop.f32.mrb[0].mxu0
        %1122 = vmatprep.mubr.bf16.mxu0 0
        %1123 = vmatmul.mubr.bf16.gmra.mrb[0].mxu0 %v1061
        %v1124 = vpop.f32.mrb[0].mxu0
        %v1125 = vadd.f32 0.0, %v1124
        %v1126 = vpop.f32.mrb[0].mxu0
        %v1127 = vpop.f32.mrb[0].mxu0
        %v1128 = vadd.f32 0.0, %v1127
        %v1129 = vpop.f32.mrb[0].mxu0
        %1130 = vdwg.mxu0
        %v1131 = vadd.f32 %v901, %v1101
        %v1132 = vadd.f32 %v902, %v1104
        %v1133 = vadd.f32 %v903, %v1109
        %v1134 = vadd.f32 %v904, %v1112
        %v1135 = vadd.f32 %v905, %v1117
        %v1136 = vadd.f32 %v906, %v1120
        %v1137 = vadd.f32 %v907, %v1125
        %v1138 = vadd.f32 %v908, %v1128
        %s1139 = scalar_lea.vmem %s206, 8
        %v1140 = vld [vmem:[%s1139] sm:$0xf]
        %v1141 = vld [vmem:[%s1139 + $0x8] sm:$0xf]
        %v1142 = vld [vmem:[%s1139 + $0x10] sm:$0xf]
        %v1143 = vld [vmem:[%s1139 + $0x18] sm:$0xf]
        %v1144 = vld [vmem:[%s1139 + $0x20] sm:$0xf]
        %v1145 = vld [vmem:[%s1139 + $0x28] sm:$0xf]
        %v1146 = vld [vmem:[%s1139 + $0x30] sm:$0xf]
        %v1147 = vld [vmem:[%s1139 + $0x38] sm:$0xf]
        %s1148 = scalar_lea.vmem %s210, 12
        %v1149 = vld [vmem:[%s1148] sm:$0x3]
        %v1158 = vunpack.c.l.b16 %v1140
        %v1159 = vunpack.c.l.b16 %v1141
        %v1160 = vunpack.c.l.b16 %v1142
        %v1161 = vunpack.c.l.b16 %v1143
        %v1162 = vunpack.c.l.b16 %v1144
        %v1163 = vunpack.c.l.b16 %v1145
        %v1164 = vunpack.c.l.b16 %v1146
        %v1165 = vunpack.c.l.b16 %v1147
        %v1166 = vpack.c.b16 %v1159, %v1158
        %v1167 = vpack.c.b16 %v1161, %v1160
        %v1168 = vpack.c.b16 %v1163, %v1162
        %v1169 = vpack.c.b16 %v1165, %v1164
        %v1171 = vsel %vm256, %v1166, 0
        %v1174 = vsel %vm256, %v1167, 0
        %v1177 = vsel %vm256, %v1168, 0
        %v1180 = vsel %vm256, %v1169, 0
        %v1183 = vsel %vm269, %v1149, 0
        %1185 = vmatprep.subr.bf16.mxu0 0
        %1186 = vmatpush1.bf16.msra.mxu0 %v1183
        %1187 = vmatprep.subr.bf16.mxu0 0
        %1188 = vmatpush1.bf16.msra.mxu0 0
        %1189 = vmatprep.subr.bf16.mxu0 0
        %1190 = vmatpush1.bf16.msra.mxu0 0
        %1191 = vmatprep.subr.bf16.mxu0 0
        %1192 = vmatpush1.bf16.msra.mxu0 0
        %1193 = vmatprep.subr.bf16.mxu0 0
        %1194 = vmatpush1.bf16.msra.mxu0 0
        %1195 = vmatprep.subr.bf16.mxu0 0
        %1196 = vmatpush1.bf16.msra.mxu0 0
        %1197 = vmatprep.subr.bf16.mxu0 0
        %1198 = vmatpush1.bf16.msra.mxu0 0
        %1199 = vmatprep.subr.bf16.mxu0 0
        %1200 = vmatpush1.bf16.msra.mxu0 0
        %1201 = vmatprep.subr.bf16.mxu0 0
        %1202 = vmatpush1.bf16.msra.mxu0 0
        %1203 = vmatprep.subr.bf16.mxu0 0
        %1204 = vmatpush1.bf16.msra.mxu0 0
        %1205 = vmatprep.subr.bf16.mxu0 0
        %1206 = vmatpush1.bf16.msra.mxu0 0
        %1207 = vmatprep.subr.bf16.mxu0 0
        %1208 = vmatpush1.bf16.msra.mxu0 0
        %1209 = vmatprep.subr.bf16.mxu0 0
        %1210 = vmatpush1.bf16.msra.mxu0 0
        %1211 = vmatprep.subr.bf16.mxu0 0
        %1212 = vmatpush1.bf16.msra.mxu0 0
        %1213 = vmatprep.subr.bf16.mxu0 0
        %1214 = vmatpush1.bf16.msra.mxu0 0
        %1215 = vmatprep.subr.bf16.mxu0 0
        %1216 = vmatpush1.bf16.msra.mxu0 0
        %1217 = vmatprep.mubr.bf16.mxu0 0
        %1218 = vmatmul.mubr.bf16.gmra.mrb[0].mxu0 %v1171
        %v1219 = vpop.f32.mrb[0].mxu0
        %v1220 = vadd.f32 0.0, %v1219
        %v1221 = vpop.f32.mrb[0].mxu0
        %v1222 = vpop.f32.mrb[0].mxu0
        %v1223 = vadd.f32 0.0, %v1222
        %v1224 = vpop.f32.mrb[0].mxu0
        %1225 = vmatprep.mubr.bf16.mxu0 0
        %1226 = vmatmul.mubr.bf16.gmra.mrb[0].mxu0 %v1174
        %v1227 = vpop.f32.mrb[0].mxu0
        %v1228 = vadd.f32 0.0, %v1227
        %v1229 = vpop.f32.mrb[0].mxu0
        %v1230 = vpop.f32.mrb[0].mxu0
        %v1231 = vadd.f32 0.0, %v1230
        %v1232 = vpop.f32.mrb[0].mxu0
        %1233 = vmatprep.mubr.bf16.mxu0 0
        %1234 = vmatmul.mubr.bf16.gmra.mrb[0].mxu0 %v1177
        %v1235 = vpop.f32.mrb[0].mxu0
        %v1236 = vadd.f32 0.0, %v1235
        %v1237 = vpop.f32.mrb[0].mxu0
        %v1238 = vpop.f32.mrb[0].mxu0
        %v1239 = vadd.f32 0.0, %v1238
        %v1240 = vpop.f32.mrb[0].mxu0
        %1241 = vmatprep.mubr.bf16.mxu0 0
        %1242 = vmatmul.mubr.bf16.gmra.mrb[0].mxu0 %v1180
        %v1243 = vpop.f32.mrb[0].mxu0
        %v1244 = vadd.f32 0.0, %v1243
        %v1245 = vpop.f32.mrb[0].mxu0
        %v1246 = vpop.f32.mrb[0].mxu0
        %v1247 = vadd.f32 0.0, %v1246
        %v1248 = vpop.f32.mrb[0].mxu0
        %1249 = vdwg.mxu0
        %v1250 = vadd.f32 %v1131, %v1220
        %v1251 = vadd.f32 %v1132, %v1223
        %v1252 = vadd.f32 %v1133, %v1228
        %v1253 = vadd.f32 %v1134, %v1231
        %v1254 = vadd.f32 %v1135, %v1236
        %v1255 = vadd.f32 %v1136, %v1239
        %v1256 = vadd.f32 %v1137, %v1244
        %v1257 = vadd.f32 %v1138, %v1247
        %s1258 = scalar_lea.vmem %s206, 80
        %v1259 = vld [vmem:[%s1258] sm:$0xf]
        %v1260 = vld [vmem:[%s1258 + $0x8] sm:$0xf]
        %v1261 = vld [vmem:[%s1258 + $0x10] sm:$0xf]
        %v1262 = vld [vmem:[%s1258 + $0x18] sm:$0xf]
        %v1263 = vld [vmem:[%s1258 + $0x20] sm:$0xf]
        %v1264 = vld [vmem:[%s1258 + $0x28] sm:$0xf]
        %v1265 = vld [vmem:[%s1258 + $0x30] sm:$0xf]
        %v1266 = vld [vmem:[%s1258 + $0x38] sm:$0xf]
        %s1267 = scalar_lea.vmem %s210, 14
        %v1268 = vld [vmem:[%s1267] sm:$0x3]
        %v1277 = vunpack.c.l.b16 %v1259
        %v1278 = vunpack.c.l.b16 %v1260
        %v1279 = vunpack.c.l.b16 %v1261
        %v1280 = vunpack.c.l.b16 %v1262
        %v1281 = vunpack.c.l.b16 %v1263
        %v1282 = vunpack.c.l.b16 %v1264
        %v1283 = vunpack.c.l.b16 %v1265
        %v1284 = vunpack.c.l.b16 %v1266
        %v1285 = vpack.c.b16 %v1278, %v1277
        %v1286 = vpack.c.b16 %v1280, %v1279
        %v1287 = vpack.c.b16 %v1282, %v1281
        %v1288 = vpack.c.b16 %v1284, %v1283
        %v1290 = vsel %vm256, %v1285, 0
        %v1293 = vsel %vm256, %v1286, 0
        %v1296 = vsel %vm256, %v1287, 0
        %v1299 = vsel %vm256, %v1288, 0
        %v1302 = vsel %vm269, %v1268, 0
        %1304 = vmatprep.subr.bf16.mxu0 0
        %1305 = vmatpush1.bf16.msra.mxu0 %v1302
        %1306 = vmatprep.subr.bf16.mxu0 0
        %1307 = vmatpush1.bf16.msra.mxu0 0
        %1308 = vmatprep.subr.bf16.mxu0 0
        %1309 = vmatpush1.bf16.msra.mxu0 0
        %1310 = vmatprep.subr.bf16.mxu0 0
        %1311 = vmatpush1.bf16.msra.mxu0 0
        %1312 = vmatprep.subr.bf16.mxu0 0
        %1313 = vmatpush1.bf16.msra.mxu0 0
        %1314 = vmatprep.subr.bf16.mxu0 0
        %1315 = vmatpush1.bf16.msra.mxu0 0
        %1316 = vmatprep.subr.bf16.mxu0 0
        %1317 = vmatpush1.bf16.msra.mxu0 0
        %1318 = vmatprep.subr.bf16.mxu0 0
        %1319 = vmatpush1.bf16.msra.mxu0 0
        %1320 = vmatprep.subr.bf16.mxu0 0
        %1321 = vmatpush1.bf16.msra.mxu0 0
        %1322 = vmatprep.subr.bf16.mxu0 0
        %1323 = vmatpush1.bf16.msra.mxu0 0
        %1324 = vmatprep.subr.bf16.mxu0 0
        %1325 = vmatpush1.bf16.msra.mxu0 0
        %1326 = vmatprep.subr.bf16.mxu0 0
        %1327 = vmatpush1.bf16.msra.mxu0 0
        %1328 = vmatprep.subr.bf16.mxu0 0
        %1329 = vmatpush1.bf16.msra.mxu0 0
        %1330 = vmatprep.subr.bf16.mxu0 0
        %1331 = vmatpush1.bf16.msra.mxu0 0
        %1332 = vmatprep.subr.bf16.mxu0 0
        %1333 = vmatpush1.bf16.msra.mxu0 0
        %1334 = vmatprep.subr.bf16.mxu0 0
        %1335 = vmatpush1.bf16.msra.mxu0 0
        %1336 = vmatprep.mubr.bf16.mxu0 0
        %1337 = vmatmul.mubr.bf16.gmra.mrb[0].mxu0 %v1290
        %v1338 = vpop.f32.mrb[0].mxu0
        %v1339 = vadd.f32 0.0, %v1338
        %v1340 = vpop.f32.mrb[0].mxu0
        %v1341 = vpop.f32.mrb[0].mxu0
        %v1342 = vadd.f32 0.0, %v1341
        %v1343 = vpop.f32.mrb[0].mxu0
        %1344 = vmatprep.mubr.bf16.mxu0 0
        %1345 = vmatmul.mubr.bf16.gmra.mrb[0].mxu0 %v1293
        %v1346 = vpop.f32.mrb[0].mxu0
        %v1347 = vadd.f32 0.0, %v1346
        %v1348 = vpop.f32.mrb[0].mxu0
        %v1349 = vpop.f32.mrb[0].mxu0
        %v1350 = vadd.f32 0.0, %v1349
        %v1351 = vpop.f32.mrb[0].mxu0
        %1352 = vmatprep.mubr.bf16.mxu0 0
        %1353 = vmatmul.mubr.bf16.gmra.mrb[0].mxu0 %v1296
        %v1354 = vpop.f32.mrb[0].mxu0
        %v1355 = vadd.f32 0.0, %v1354
        %v1356 = vpop.f32.mrb[0].mxu0
        %v1357 = vpop.f32.mrb[0].mxu0
        %v1358 = vadd.f32 0.0, %v1357
        %v1359 = vpop.f32.mrb[0].mxu0
        %1360 = vmatprep.mubr.bf16.mxu0 0
        %1361 = vmatmul.mubr.bf16.gmra.mrb[0].mxu0 %v1299
        %v1362 = vpop.f32.mrb[0].mxu0
        %v1363 = vadd.f32 0.0, %v1362
        %v1364 = vpop.f32.mrb[0].mxu0
        %v1365 = vpop.f32.mrb[0].mxu0
        %v1366 = vadd.f32 0.0, %v1365
        %v1367 = vpop.f32.mrb[0].mxu0
        %1368 = vdwg.mxu0
        %v1369 = vadd.f32 %v1250, %v1339
        %v1370 = vadd.f32 %v1251, %v1342
        %v1371 = vadd.f32 %v1252, %v1347
        %v1372 = vadd.f32 %v1253, %v1350
        %v1373 = vadd.f32 %v1254, %v1355
        %v1374 = vadd.f32 %v1255, %v1358
        %v1375 = vadd.f32 %v1256, %v1363
        %v1376 = vadd.f32 %v1257, %v1366
        %v1377 = vld [vmem:[%s1139] sm:$0xf]
        %v1378 = vld [vmem:[%s1139 + $0x4] sm:$0x1]
        %v1379 = vld [vmem:[%s1139 + $0x8] sm:$0xf]
        %v1380 = vld [vmem:[%s1139 + $0xc] sm:$0x1]
        %v1381 = vld [vmem:[%s1139 + $0x10] sm:$0xf]
        %v1382 = vld [vmem:[%s1139 + $0x14] sm:$0x1]
        %v1383 = vld [vmem:[%s1139 + $0x18] sm:$0xf]
        %v1384 = vld [vmem:[%s1139 + $0x1c] sm:$0x1]
        %v1385 = vld [vmem:[%s1139 + $0x20] sm:$0xf]
        %v1386 = vld [vmem:[%s1139 + $0x24] sm:$0x1]
        %v1387 = vld [vmem:[%s1139 + $0x28] sm:$0xf]
        %v1388 = vld [vmem:[%s1139 + $0x2c] sm:$0x1]
        %v1389 = vld [vmem:[%s1139 + $0x30] sm:$0xf]
        %v1390 = vld [vmem:[%s1139 + $0x34] sm:$0x1]
        %v1391 = vld [vmem:[%s1139 + $0x38] sm:$0xf]
        %v1392 = vld [vmem:[%s1139 + $0x3c] sm:$0x1]
        %v1394 = vshrl.u32 %v1377, 16
        %v1396 = vrot.slane %v1394, 4
        %v1397 = vshll.u32 %v1377, 16
        %v1399 = vrot.slane %v1397, 5
        %v1400 = vor.u32 %v1396, %v1399
        %v1401 = vrot.slane %v1400, 4
        %v1403 = vshll.u32 %v1378, 16
        %v1405 = vrot.slane %v1403, 5
        %v1406 = vsel %vm456, %v1401, %v1405
        %v1408 = vshrl.u32 %v1379, 16
        %v1410 = vrot.slane %v1408, 4
        %v1411 = vshll.u32 %v1379, 16
        %v1413 = vrot.slane %v1411, 5
        %v1414 = vor.u32 %v1410, %v1413
        %v1415 = vrot.slane %v1414, 4
        %v1417 = vshll.u32 %v1380, 16
        %v1419 = vrot.slane %v1417, 5
        %v1420 = vsel %vm456, %v1415, %v1419
        %v1422 = vshrl.u32 %v1381, 16
        %v1424 = vrot.slane %v1422, 4
        %v1425 = vshll.u32 %v1381, 16
        %v1427 = vrot.slane %v1425, 5
        %v1428 = vor.u32 %v1424, %v1427
        %v1429 = vrot.slane %v1428, 4
        %v1431 = vshll.u32 %v1382, 16
        %v1433 = vrot.slane %v1431, 5
        %v1434 = vsel %vm456, %v1429, %v1433
        %v1436 = vshrl.u32 %v1383, 16
        %v1438 = vrot.slane %v1436, 4
        %v1439 = vshll.u32 %v1383, 16
        %v1441 = vrot.slane %v1439, 5
        %v1442 = vor.u32 %v1438, %v1441
        %v1443 = vrot.slane %v1442, 4
        %v1445 = vshll.u32 %v1384, 16
        %v1447 = vrot.slane %v1445, 5
        %v1448 = vsel %vm456, %v1443, %v1447
        %v1450 = vshrl.u32 %v1385, 16
        %v1452 = vrot.slane %v1450, 4
        %v1453 = vshll.u32 %v1385, 16
        %v1455 = vrot.slane %v1453, 5
        %v1456 = vor.u32 %v1452, %v1455
        %v1457 = vrot.slane %v1456, 4
        %v1459 = vshll.u32 %v1386, 16
        %v1461 = vrot.slane %v1459, 5
        %v1462 = vsel %vm456, %v1457, %v1461
        %v1464 = vshrl.u32 %v1387, 16
        %v1466 = vrot.slane %v1464, 4
        %v1467 = vshll.u32 %v1387, 16
        %v1469 = vrot.slane %v1467, 5
        %v1470 = vor.u32 %v1466, %v1469
        %v1471 = vrot.slane %v1470, 4
        %v1473 = vshll.u32 %v1388, 16
        %v1475 = vrot.slane %v1473, 5
        %v1476 = vsel %vm456, %v1471, %v1475
        %v1478 = vshrl.u32 %v1389, 16
        %v1480 = vrot.slane %v1478, 4
        %v1481 = vshll.u32 %v1389, 16
        %v1483 = vrot.slane %v1481, 5
        %v1484 = vor.u32 %v1480, %v1483
        %v1485 = vrot.slane %v1484, 4
        %v1487 = vshll.u32 %v1390, 16
        %v1489 = vrot.slane %v1487, 5
        %v1490 = vsel %vm456, %v1485, %v1489
        %v1492 = vshrl.u32 %v1391, 16
        %v1494 = vrot.slane %v1492, 4
        %v1495 = vshll.u32 %v1391, 16
        %v1497 = vrot.slane %v1495, 5
        %v1498 = vor.u32 %v1494, %v1497
        %v1499 = vrot.slane %v1498, 4
        %v1501 = vshll.u32 %v1392, 16
        %v1503 = vrot.slane %v1501, 5
        %v1504 = vsel %vm456, %v1499, %v1503
        %s1505 = scalar_lea.vmem %s210, 16
        %v1506 = vld [vmem:[%s1505] sm:$0x3]
        %v1507 = vunpack.c.l.b16 %v1406
        %v1508 = vunpack.c.l.b16 %v1420
        %v1509 = vunpack.c.l.b16 %v1434
        %v1510 = vunpack.c.l.b16 %v1448
        %v1511 = vunpack.c.l.b16 %v1462
        %v1512 = vunpack.c.l.b16 %v1476
        %v1513 = vunpack.c.l.b16 %v1490
        %v1514 = vunpack.c.l.b16 %v1504
        %v1515 = vpack.c.b16 %v1508, %v1507
        %v1516 = vpack.c.b16 %v1510, %v1509
        %v1517 = vpack.c.b16 %v1512, %v1511
        %v1518 = vpack.c.b16 %v1514, %v1513
        %v1520 = vsel %vm256, %v1515, 0
        %v1523 = vsel %vm256, %v1516, 0
        %v1526 = vsel %vm256, %v1517, 0
        %v1529 = vsel %vm256, %v1518, 0
        %v1532 = vsel %vm269, %v1506, 0
        %1534 = vmatprep.subr.bf16.mxu0 0
        %1535 = vmatpush1.bf16.msra.mxu0 %v1532
        %1536 = vmatprep.subr.bf16.mxu0 0
        %1537 = vmatpush1.bf16.msra.mxu0 0
        %1538 = vmatprep.subr.bf16.mxu0 0
        %1539 = vmatpush1.bf16.msra.mxu0 0
        %1540 = vmatprep.subr.bf16.mxu0 0
        %1541 = vmatpush1.bf16.msra.mxu0 0
        %1542 = vmatprep.subr.bf16.mxu0 0
        %1543 = vmatpush1.bf16.msra.mxu0 0
        %1544 = vmatprep.subr.bf16.mxu0 0
        %1545 = vmatpush1.bf16.msra.mxu0 0
        %1546 = vmatprep.subr.bf16.mxu0 0
        %1547 = vmatpush1.bf16.msra.mxu0 0
        %1548 = vmatprep.subr.bf16.mxu0 0
        %1549 = vmatpush1.bf16.msra.mxu0 0
        %1550 = vmatprep.subr.bf16.mxu0 0
        %1551 = vmatpush1.bf16.msra.mxu0 0
        %1552 = vmatprep.subr.bf16.mxu0 0
        %1553 = vmatpush1.bf16.msra.mxu0 0
        %1554 = vmatprep.subr.bf16.mxu0 0
        %1555 = vmatpush1.bf16.msra.mxu0 0
        %1556 = vmatprep.subr.bf16.mxu0 0
        %1557 = vmatpush1.bf16.msra.mxu0 0
        %1558 = vmatprep.subr.bf16.mxu0 0
        %1559 = vmatpush1.bf16.msra.mxu0 0
        %1560 = vmatprep.subr.bf16.mxu0 0
        %1561 = vmatpush1.bf16.msra.mxu0 0
        %1562 = vmatprep.subr.bf16.mxu0 0
        %1563 = vmatpush1.bf16.msra.mxu0 0
        %1564 = vmatprep.subr.bf16.mxu0 0
        %1565 = vmatpush1.bf16.msra.mxu0 0
        %1566 = vmatprep.mubr.bf16.mxu0 0
        %1567 = vmatmul.mubr.bf16.gmra.mrb[0].mxu0 %v1520
        %v1568 = vpop.f32.mrb[0].mxu0
        %v1569 = vadd.f32 0.0, %v1568
        %v1570 = vpop.f32.mrb[0].mxu0
        %v1571 = vpop.f32.mrb[0].mxu0
        %v1572 = vadd.f32 0.0, %v1571
        %v1573 = vpop.f32.mrb[0].mxu0
        %1574 = vmatprep.mubr.bf16.mxu0 0
        %1575 = vmatmul.mubr.bf16.gmra.mrb[0].mxu0 %v1523
        %v1576 = vpop.f32.mrb[0].mxu0
        %v1577 = vadd.f32 0.0, %v1576
        %v1578 = vpop.f32.mrb[0].mxu0
        %v1579 = vpop.f32.mrb[0].mxu0
        %v1580 = vadd.f32 0.0, %v1579
        %v1581 = vpop.f32.mrb[0].mxu0
        %1582 = vmatprep.mubr.bf16.mxu0 0
        %1583 = vmatmul.mubr.bf16.gmra.mrb[0].mxu0 %v1526
        %v1584 = vpop.f32.mrb[0].mxu0
        %v1585 = vadd.f32 0.0, %v1584
        %v1586 = vpop.f32.mrb[0].mxu0
        %v1587 = vpop.f32.mrb[0].mxu0
        %v1588 = vadd.f32 0.0, %v1587
        %v1589 = vpop.f32.mrb[0].mxu0
        %1590 = vmatprep.mubr.bf16.mxu0 0
        %1591 = vmatmul.mubr.bf16.gmra.mrb[0].mxu0 %v1529
        %v1592 = vpop.f32.mrb[0].mxu0
        %v1593 = vadd.f32 0.0, %v1592
        %v1594 = vpop.f32.mrb[0].mxu0
        %v1595 = vpop.f32.mrb[0].mxu0
        %v1596 = vadd.f32 0.0, %v1595
        %v1597 = vpop.f32.mrb[0].mxu0
        %1598 = vdwg.mxu0
        %v1599 = vadd.f32 %v1369, %v1569
        %v1600 = vadd.f32 %v1370, %v1572
        %v1601 = vadd.f32 %v1371, %v1577
        %v1602 = vadd.f32 %v1372, %v1580
        %v1603 = vadd.f32 %v1373, %v1585
        %v1604 = vadd.f32 %v1374, %v1588
        %v1605 = vadd.f32 %v1375, %v1593
        %v1606 = vadd.f32 %v1376, %v1596
        %v1607 = vld [vmem:[%s213] sm:$0x1]
        %v1609 = vlaneseq
        %v1610 = vshrl.u32 %v1609, 7
        %v1611 = vsub.s32 0, %v1610
        %v1612 = vrot.slane %v1607, %v1611
        %v1614 = vadd.f32 %v1599, %v1612
        %v1615 = vadd.f32 %v1600, %v1612
        %v1616 = vadd.f32 %v1601, %v1612
        %v1617 = vadd.f32 %v1602, %v1612
        %v1618 = vadd.f32 %v1603, %v1612
        %v1619 = vadd.f32 %v1604, %v1612
        %v1620 = vadd.f32 %v1605, %v1612
        %v1621 = vadd.f32 %v1606, %v1612
        %1622 = vst [vmem:[%s201] sm:$0xff] %v1614
        %1623 = vst [vmem:[%s201 + $0x8] sm:$0xff] %v1615
        %1624 = vst [vmem:[%s201 + $0x10] sm:$0xff] %v1616
        %1625 = vst [vmem:[%s201 + $0x18] sm:$0xff] %v1617
        %1626 = vst [vmem:[%s201 + $0x20] sm:$0xff] %v1618
        %1627 = vst [vmem:[%s201 + $0x28] sm:$0xff] %v1619
        %1628 = vst [vmem:[%s201 + $0x30] sm:$0xff] %v1620
        %1629 = vst [vmem:[%s201 + $0x38] sm:$0xff] %v1621
        %s1630 = sand.u32 %s117, 1
        %s1631 = scalar_lea.sflag [#allocation3], %s1630
        %s1632 = sand.u32 %s117, 1
        %s1633 = smul.addr %s1632, 64
        %s1634 = scalar_lea.vmem [#allocation2], %s1633
        // Predicated region
        $region33: #{tpu_custom_call.1} parent=31 // pred_check
          %p1635 = pneg %p127
        $region34: #{tpu_custom_call.1} parent=31 // pred_check_branch
          %1637 = sbr.rel (%p1635) target = $region36
        $region35: #{tpu_custom_call.1} parent=31 // pred_region
          %s1638 = smul.u32 8, %s21
          %s1640 = ssub.s32 1024, 1024
          %1641 = vsyncadd %s1631, %s1640
          %s1642 = sadd.s32 %s22, %s1638
          %s1643 = smul.addr %s1642, 128
          %s1644 = scalar_lea.hbm %s3, %s1643
          %s1645 = sshll.u32 %s1634, 4
          %s1646 = int_to_ptr.vmem [resolvable:$true] %s1645
          %1651 = dma.vmem_to_hbm [thread:$0]  %s1646, 1024, %s1644, %s1631, 128, 128, 8
        $region36: #{tpu_custom_call.1} parent=31 // pred_fallthru
          _
      $region32: #{tpu_custom_call.1} parent=5 // pred_fallthru
        _
      %p1652 = scmp.le.s32.totalorder 2, %s12
      // Predicated region
      $region37: #{tpu_custom_call.1} parent=5 // pred_check
        %p1653 = pneg %p1652
      $region38: #{tpu_custom_call.1} parent=5 // pred_check_branch
        %1655 = sbr.rel (%p1653) target = $region40
      $region39: #{tpu_custom_call.1} parent=5 // pred_region
        %s1656 = ssub.s32 %s12, 2
        // Predicated region
        $region41: #{tpu_custom_call.1} parent=39 // pred_check
          %p1657 = pneg %p133
        $region42: #{tpu_custom_call.1} parent=39 // pred_check_branch
          %1659 = sbr.rel (%p1657) target = $region44
        $region43: #{tpu_custom_call.1} parent=39 // pred_region
          %s1660 = sand.u32 %s118, 1
          %s1661 = scalar_lea.sflag [#allocation3], %s1660
          %s1662 = sand.u32 %s118, 1
          %s1663 = smul.addr %s1662, 64
          %s1664 = scalar_lea.vmem [#allocation2], %s1663
          %1665 = dma.done %s1661, 1024
        $region44: #{tpu_custom_call.1} parent=39 // pred_fallthru
          _
      $region40: #{tpu_custom_call.1} parent=5 // pred_fallthru
        _
    $region6: #{tpu_custom_call.1} parent=1 // loop_footer
      %s16 = sadd.s32 1, %s12
    $region7: #{tpu_custom_call.1} parent=1 // loop_footer_branch
      %11 = sbr.rel target = $region3
    $region8: #{tpu_custom_call.1} parent=1 // loop_exit
      _
    %1666 = vsyncpa [#allocation3], 1
    %s1667 = scalar_lea.sflag [#allocation3], 1
    %1668 = vsyncpa %s1667, 1

// kernel: tpu_custom_call.1
$region0: #{tpu_custom_call.1}
  #allocation0 [shape = 'u32[]', space=smem, size = 0x4, offset = 0x4, fixed_abs, tag = 'smem constant byte address 0x4 - core index']
  #allocation1 [shape = 'u32[144,128]{1,0:T(1,128)}', space=vmem, size = 0x12000, scoped, tag = 'internal scratch']
  #allocation2 [shape = 'f32[128,128]{1,0:T(8,128)}', space=vmem, size = 0x10000, scoped, tag = 'scratch operand']
  %s0 = inlined_call_operand.vmem [shape: bf16[128,36], index: 0, kind: input, shape index: {}]
  %s1 = inlined_call_operand.vmem [shape: bf16[36,128], index: 1, kind: input, shape index: {}]
  %s2 = inlined_call_operand.vmem [shape: f32[1,128], index: 2, kind: input, shape index: {}]
  %s3 = inlined_call_operand.hbm [shape: f32[128,128], index: 3, kind: output, shape index: {}]
  %s4 = sld [smem:[#allocation0]]
  $region30: #{tpu_custom_call.1} parent=0
    _
  %s6 = ssub.s32 1, %s4
  %s7 = scalar_select 0, %s6, %s4
  $region1: #{tpu_custom_call.1} parent=0
    #allocation3 [shape = 'u8[65536]{0}', space=vmem, size = 0x10000, scoped, tag = 'output window, operand 0, single buffered']
    #allocation4 [shape = 's32[1]{0}', space=sflag, size = 0x4, scoped, tag = 'scoped memory for tpu_custom_call.1']
    %8 = vsyncpa [#allocation4], 0
    // Predicated region
    $region2: #{tpu_custom_call.1} parent=1 // pred_check
      _
    $region3: #{tpu_custom_call.1} parent=1 // pred_check_branch
      %10 = sbr.rel (0) target = $region5
    $region4: #{tpu_custom_call.1} parent=1 // pred_region
      _
    $region5: #{tpu_custom_call.1} parent=1 // pred_fallthru
      _
    // Predicated region
    $region6: #{tpu_custom_call.1} parent=1 // pred_check
      _
    $region7: #{tpu_custom_call.1} parent=1 // pred_check_branch
      %12 = sbr.rel (0) target = $region9
    $region8: #{tpu_custom_call.1} parent=1 // pred_region
      _
    $region9: #{tpu_custom_call.1} parent=1 // pred_fallthru
      _
    // Predicated region
    $region10: #{tpu_custom_call.1} parent=1 // pred_check
      _
    $region11: #{tpu_custom_call.1} parent=1 // pred_check_branch
      %14 = sbr.rel (0) target = $region13
    $region12: #{tpu_custom_call.1} parent=1 // pred_region
      _
    $region13: #{tpu_custom_call.1} parent=1 // pred_fallthru
      _
    %p16 = scmp.eq.s32.totalorder 0, 0
    // Predicated region
    $region14: #{tpu_custom_call.1} parent=1 // pred_check
      %p17 = pneg %p16
    $region15: #{tpu_custom_call.1} parent=1 // pred_check_branch
      %19 = sbr.rel (%p17) target = $region17
    $region16: #{tpu_custom_call.1} parent=1 // pred_region
      %20 = vst [vmem:[#allocation2] sm:$0xff] 0.0
      %21 = vst [vmem:[#allocation2 + $0x8] sm:$0xff] 0.0
      %22 = vst [vmem:[#allocation2 + $0x10] sm:$0xff] 0.0
      %23 = vst [vmem:[#allocation2 + $0x18] sm:$0xff] 0.0
      %24 = vst [vmem:[#allocation2 + $0x20] sm:$0xff] 0.0
      %25 = vst [vmem:[#allocation2 + $0x28] sm:$0xff] 0.0
      %26 = vst [vmem:[#allocation2 + $0x30] sm:$0xff] 0.0
      %27 = vst [vmem:[#allocation2 + $0x38] sm:$0xff] 0.0
      %28 = vst [vmem:[#allocation2 + $0x40] sm:$0xff] 0.0
      %29 = vst [vmem:[#allocation2 + $0x48] sm:$0xff] 0.0
      %30 = vst [vmem:[#allocation2 + $0x50] sm:$0xff] 0.0
      %31 = vst [vmem:[#allocation2 + $0x58] sm:$0xff] 0.0
      %32 = vst [vmem:[#allocation2 + $0x60] sm:$0xff] 0.0
      %33 = vst [vmem:[#allocation2 + $0x68] sm:$0xff] 0.0
      %34 = vst [vmem:[#allocation2 + $0x70] sm:$0xff] 0.0
      %35 = vst [vmem:[#allocation2 + $0x78] sm:$0xff] 0.0
    $region17: #{tpu_custom_call.1} parent=1 // pred_fallthru
      _
    %v36 = vld [vmem:[#allocation2] sm:$0xff]
    %v37 = vld [vmem:[#allocation2 + $0x8] sm:$0xff]
    %v38 = vld [vmem:[#allocation2 + $0x10] sm:$0xff]
    %v39 = vld [vmem:[#allocation2 + $0x18] sm:$0xff]
    %v40 = vld [vmem:[#allocation2 + $0x20] sm:$0xff]
    %v41 = vld [vmem:[#allocation2 + $0x28] sm:$0xff]
    %v42 = vld [vmem:[#allocation2 + $0x30] sm:$0xff]
    %v43 = vld [vmem:[#allocation2 + $0x38] sm:$0xff]
    %v44 = vld [vmem:[#allocation2 + $0x40] sm:$0xff]
    %v45 = vld [vmem:[#allocation2 + $0x48] sm:$0xff]
    %v46 = vld [vmem:[#allocation2 + $0x50] sm:$0xff]
    %v47 = vld [vmem:[#allocation2 + $0x58] sm:$0xff]
    %v48 = vld [vmem:[#allocation2 + $0x60] sm:$0xff]
    %v49 = vld [vmem:[#allocation2 + $0x68] sm:$0xff]
    %v50 = vld [vmem:[#allocation2 + $0x70] sm:$0xff]
    %v51 = vld [vmem:[#allocation2 + $0x78] sm:$0xff]
    %v52 = vld [vmem:[%s0] sm:$0xf]
    %v53 = vld [vmem:[%s0 + $0x4] sm:$0xf]
    %v54 = vld [vmem:[%s0 + $0x8] sm:$0xf]
    %v55 = vld [vmem:[%s0 + $0xc] sm:$0xf]
    %v56 = vld [vmem:[%s0 + $0x10] sm:$0xf]
    %v57 = vld [vmem:[%s0 + $0x14] sm:$0xf]
    %v58 = vld [vmem:[%s0 + $0x18] sm:$0xf]
    %v59 = vld [vmem:[%s0 + $0x1c] sm:$0xf]
    %v60 = vld [vmem:[%s0 + $0x20] sm:$0xf]
    %v61 = vld [vmem:[%s0 + $0x24] sm:$0xf]
    %v62 = vld [vmem:[%s0 + $0x28] sm:$0xf]
    %v63 = vld [vmem:[%s0 + $0x2c] sm:$0xf]
    %v64 = vld [vmem:[%s0 + $0x30] sm:$0xf]
    %v65 = vld [vmem:[%s0 + $0x34] sm:$0xf]
    %v66 = vld [vmem:[%s0 + $0x38] sm:$0xf]
    %v67 = vld [vmem:[%s0 + $0x3c] sm:$0xf]
    %v68 = vld [vmem:[%s1] sm:$0xf]
    %v69 = vld [vmem:[%s1 + $0x4] sm:$0xf]
    %v70 = vld [vmem:[%s1 + $0x8] sm:$0xf]
    %v71 = vld [vmem:[%s1 + $0xc] sm:$0xf]
    %v72 = vld [vmem:[%s1 + $0x10] sm:$0x3]
    %v89 = vunpack.c.l.b16 %v52
    %v90 = vunpack.c.l.b16 %v53
    %v91 = vunpack.c.l.b16 %v54
    %v92 = vunpack.c.l.b16 %v55
    %v93 = vunpack.c.l.b16 %v56
    %v94 = vunpack.c.l.b16 %v57
    %v95 = vunpack.c.l.b16 %v58
    %v96 = vunpack.c.l.b16 %v59
    %v97 = vunpack.c.l.b16 %v60
    %v98 = vunpack.c.l.b16 %v61
    %v99 = vunpack.c.l.b16 %v62
    %v100 = vunpack.c.l.b16 %v63
    %v101 = vunpack.c.l.b16 %v64
    %v102 = vunpack.c.l.b16 %v65
    %v103 = vunpack.c.l.b16 %v66
    %v104 = vunpack.c.l.b16 %v67
    %v105 = vpack.c.b16 %v90, %v89
    %v106 = vpack.c.b16 %v92, %v91
    %v107 = vpack.c.b16 %v94, %v93
    %v108 = vpack.c.b16 %v96, %v95
    %v109 = vpack.c.b16 %v98, %v97
    %v110 = vpack.c.b16 %v100, %v99
    %v111 = vpack.c.b16 %v102, %v101
    %v112 = vpack.c.b16 %v104, %v103
    %v118 = vunpack.c.l.b16 %v68
    %v119 = vunpack.c.l.b16 %v69
    %v120 = vunpack.c.l.b16 %v70
    %v121 = vunpack.c.l.b16 %v71
    %v122 = vunpack.c.l.b16 %v72
    %v123 = vpack.c.b16 %v119, %v118
    %v124 = vpack.c.b16 %v121, %v120
    %v125 = vpack.c.b16 %v122, %v122
    %vm128 = vcmask 293888
    %v130 = vsel %vm128, %v105, 0
    %v133 = vsel %vm128, %v106, 0
    %v136 = vsel %vm128, %v107, 0
    %v139 = vsel %vm128, %v108, 0
    %v142 = vsel %vm128, %v109, 0
    %v145 = vsel %vm128, %v110, 0
    %v148 = vsel %vm128, %v111, 0
    %v151 = vsel %vm128, %v112, 0
    %vm153 = vcmask 1041408
    %v155 = vsel %vm153, %v125, 0
    %157 = vmatprep.subr.bf16.mxu0 0
    %158 = vmatpush1.bf16.msra.mxu0 %v123
    %159 = vmatprep.subr.bf16.mxu0 0
    %160 = vmatpush1.bf16.msra.mxu0 %v124
    %161 = vmatprep.subr.bf16.mxu0 0
    %162 = vmatpush1.bf16.msra.mxu0 %v155
    %163 = vmatprep.subr.bf16.mxu0 0
    %164 = vmatpush1.bf16.msra.mxu0 0
    %165 = vmatprep.subr.bf16.mxu0 0
    %166 = vmatpush1.bf16.msra.mxu0 0
    %167 = vmatprep.subr.bf16.mxu0 0
    %168 = vmatpush1.bf16.msra.mxu0 0
    %169 = vmatprep.subr.bf16.mxu0 0
    %170 = vmatpush1.bf16.msra.mxu0 0
    %171 = vmatprep.subr.bf16.mxu0 0
    %172 = vmatpush1.bf16.msra.mxu0 0
    %173 = vmatprep.subr.bf16.mxu0 0
    %174 = vmatpush1.bf16.msra.mxu0 0
    %175 = vmatprep.subr.bf16.mxu0 0
    %176 = vmatpush1.bf16.msra.mxu0 0
    %177 = vmatprep.subr.bf16.mxu0 0
    %178 = vmatpush1.bf16.msra.mxu0 0
    %179 = vmatprep.subr.bf16.mxu0 0
    %180 = vmatpush1.bf16.msra.mxu0 0
    %181 = vmatprep.subr.bf16.mxu0 0
    %182 = vmatpush1.bf16.msra.mxu0 0
    %183 = vmatprep.subr.bf16.mxu0 0
    %184 = vmatpush1.bf16.msra.mxu0 0
    %185 = vmatprep.subr.bf16.mxu0 0
    %186 = vmatpush1.bf16.msra.mxu0 0
    %187 = vmatprep.subr.bf16.mxu0 0
    %188 = vmatpush1.bf16.msra.mxu0 0
    %189 = vmatprep.mubr.bf16.mxu0 0
    %190 = vmatmul.mubr.bf16.gmra.mrb[0].mxu0 %v130
    %v191 = vpop.f32.mrb[0].mxu0
    %v192 = vadd.f32 0.0, %v191
    %v193 = vpop.f32.mrb[0].mxu0
    %v194 = vpop.f32.mrb[0].mxu0
    %v195 = vadd.f32 0.0, %v194
    %v196 = vpop.f32.mrb[0].mxu0
    %197 = vmatprep.mubr.bf16.mxu0 0
    %198 = vmatmul.mubr.bf16.gmra.mrb[0].mxu0 %v133
    %v199 = vpop.f32.mrb[0].mxu0
    %v200 = vadd.f32 0.0, %v199
    %v201 = vpop.f32.mrb[0].mxu0
    %v202 = vpop.f32.mrb[0].mxu0
    %v203 = vadd.f32 0.0, %v202
    %v204 = vpop.f32.mrb[0].mxu0
    %205 = vmatprep.mubr.bf16.mxu0 0
    %206 = vmatmul.mubr.bf16.gmra.mrb[0].mxu0 %v136
    %v207 = vpop.f32.mrb[0].mxu0
    %v208 = vadd.f32 0.0, %v207
    %v209 = vpop.f32.mrb[0].mxu0
    %v210 = vpop.f32.mrb[0].mxu0
    %v211 = vadd.f32 0.0, %v210
    %v212 = vpop.f32.mrb[0].mxu0
    %213 = vmatprep.mubr.bf16.mxu0 0
    %214 = vmatmul.mubr.bf16.gmra.mrb[0].mxu0 %v139
    %v215 = vpop.f32.mrb[0].mxu0
    %v216 = vadd.f32 0.0, %v215
    %v217 = vpop.f32.mrb[0].mxu0
    %v218 = vpop.f32.mrb[0].mxu0
    %v219 = vadd.f32 0.0, %v218
    %v220 = vpop.f32.mrb[0].mxu0
    %221 = vmatprep.mubr.bf16.mxu0 0
    %222 = vmatmul.mubr.bf16.gmra.mrb[0].mxu0 %v142
    %v223 = vpop.f32.mrb[0].mxu0
    %v224 = vadd.f32 0.0, %v223
    %v225 = vpop.f32.mrb[0].mxu0
    %v226 = vpop.f32.mrb[0].mxu0
    %v227 = vadd.f32 0.0, %v226
    %v228 = vpop.f32.mrb[0].mxu0
    %229 = vmatprep.mubr.bf16.mxu0 0
    %230 = vmatmul.mubr.bf16.gmra.mrb[0].mxu0 %v145
    %v231 = vpop.f32.mrb[0].mxu0
    %v232 = vadd.f32 0.0, %v231
    %v233 = vpop.f32.mrb[0].mxu0
    %v234 = vpop.f32.mrb[0].mxu0
    %v235 = vadd.f32 0.0, %v234
    %v236 = vpop.f32.mrb[0].mxu0
    %237 = vmatprep.mubr.bf16.mxu0 0
    %238 = vmatmul.mubr.bf16.gmra.mrb[0].mxu0 %v148
    %v239 = vpop.f32.mrb[0].mxu0
    %v240 = vadd.f32 0.0, %v239
    %v241 = vpop.f32.mrb[0].mxu0
    %v242 = vpop.f32.mrb[0].mxu0
    %v243 = vadd.f32 0.0, %v242
    %v244 = vpop.f32.mrb[0].mxu0
    %245 = vmatprep.mubr.bf16.mxu0 0
    %246 = vmatmul.mubr.bf16.gmra.mrb[0].mxu0 %v151
    %v247 = vpop.f32.mrb[0].mxu0
    %v248 = vadd.f32 0.0, %v247
    %v249 = vpop.f32.mrb[0].mxu0
    %v250 = vpop.f32.mrb[0].mxu0
    %v251 = vadd.f32 0.0, %v250
    %v252 = vpop.f32.mrb[0].mxu0
    %253 = vdwg.mxu0
    %v254 = vadd.f32 %v36, %v192
    %v255 = vadd.f32 %v37, %v195
    %v256 = vadd.f32 %v38, %v200
    %v257 = vadd.f32 %v39, %v203
    %v258 = vadd.f32 %v40, %v208
    %v259 = vadd.f32 %v41, %v211
    %v260 = vadd.f32 %v42, %v216
    %v261 = vadd.f32 %v43, %v219
    %v262 = vadd.f32 %v44, %v224
    %v263 = vadd.f32 %v45, %v227
    %v264 = vadd.f32 %v46, %v232
    %v265 = vadd.f32 %v47, %v235
    %v266 = vadd.f32 %v48, %v240
    %v267 = vadd.f32 %v49, %v243
    %v268 = vadd.f32 %v50, %v248
    %v269 = vadd.f32 %v51, %v251
    %270 = vst [vmem:[#allocation2] sm:$0xff] %v254
    %271 = vst [vmem:[#allocation2 + $0x8] sm:$0xff] %v255
    %272 = vst [vmem:[#allocation2 + $0x10] sm:$0xff] %v256
    %273 = vst [vmem:[#allocation2 + $0x18] sm:$0xff] %v257
    %274 = vst [vmem:[#allocation2 + $0x20] sm:$0xff] %v258
    %275 = vst [vmem:[#allocation2 + $0x28] sm:$0xff] %v259
    %276 = vst [vmem:[#allocation2 + $0x30] sm:$0xff] %v260
    %277 = vst [vmem:[#allocation2 + $0x38] sm:$0xff] %v261
    %278 = vst [vmem:[#allocation2 + $0x40] sm:$0xff] %v262
    %279 = vst [vmem:[#allocation2 + $0x48] sm:$0xff] %v263
    %280 = vst [vmem:[#allocation2 + $0x50] sm:$0xff] %v264
    %281 = vst [vmem:[#allocation2 + $0x58] sm:$0xff] %v265
    %282 = vst [vmem:[#allocation2 + $0x60] sm:$0xff] %v266
    %283 = vst [vmem:[#allocation2 + $0x68] sm:$0xff] %v267
    %284 = vst [vmem:[#allocation2 + $0x70] sm:$0xff] %v268
    %285 = vst [vmem:[#allocation2 + $0x78] sm:$0xff] %v269
    // Predicated region
    $region18: #{tpu_custom_call.1} parent=1 // pred_check
      %p286 = pneg %p16
    $region19: #{tpu_custom_call.1} parent=1 // pred_check_branch
      %288 = sbr.rel (%p286) target = $region21
    $region20: #{tpu_custom_call.1} parent=1 // pred_region
      %v289 = vld [vmem:[#allocation2] sm:$0xff]
      %v290 = vld [vmem:[#allocation2 + $0x8] sm:$0xff]
      %v291 = vld [vmem:[#allocation2 + $0x10] sm:$0xff]
      %v292 = vld [vmem:[#allocation2 + $0x18] sm:$0xff]
      %v293 = vld [vmem:[#allocation2 + $0x20] sm:$0xff]
      %v294 = vld [vmem:[#allocation2 + $0x28] sm:$0xff]
      %v295 = vld [vmem:[#allocation2 + $0x30] sm:$0xff]
      %v296 = vld [vmem:[#allocation2 + $0x38] sm:$0xff]
      %v297 = vld [vmem:[#allocation2 + $0x40] sm:$0xff]
      %v298 = vld [vmem:[#allocation2 + $0x48] sm:$0xff]
      %v299 = vld [vmem:[#allocation2 + $0x50] sm:$0xff]
      %v300 = vld [vmem:[#allocation2 + $0x58] sm:$0xff]
      %v301 = vld [vmem:[#allocation2 + $0x60] sm:$0xff]
      %v302 = vld [vmem:[#allocation2 + $0x68] sm:$0xff]
      %v303 = vld [vmem:[#allocation2 + $0x70] sm:$0xff]
      %v304 = vld [vmem:[#allocation2 + $0x78] sm:$0xff]
      %v305 = vld [vmem:[%s2] sm:$0x1]
      %v307 = vlaneseq
      %v308 = vshrl.u32 %v307, 7
      %v309 = vsub.s32 0, %v308
      %v310 = vrot.slane %v305, %v309
      %v312 = vadd.f32 %v289, %v310
      %v313 = vadd.f32 %v290, %v310
      %v314 = vadd.f32 %v291, %v310
      %v315 = vadd.f32 %v292, %v310
      %v316 = vadd.f32 %v293, %v310
      %v317 = vadd.f32 %v294, %v310
      %v318 = vadd.f32 %v295, %v310
      %v319 = vadd.f32 %v296, %v310
      %v320 = vadd.f32 %v297, %v310
      %v321 = vadd.f32 %v298, %v310
      %v322 = vadd.f32 %v299, %v310
      %v323 = vadd.f32 %v300, %v310
      %v324 = vadd.f32 %v301, %v310
      %v325 = vadd.f32 %v302, %v310
      %v326 = vadd.f32 %v303, %v310
      %v327 = vadd.f32 %v304, %v310
      %328 = vst [vmem:[#allocation3] sm:$0xff] %v312
      %329 = vst [vmem:[#allocation3 + $0x8] sm:$0xff] %v313
      %330 = vst [vmem:[#allocation3 + $0x10] sm:$0xff] %v314
      %331 = vst [vmem:[#allocation3 + $0x18] sm:$0xff] %v315
      %332 = vst [vmem:[#allocation3 + $0x20] sm:$0xff] %v316
      %333 = vst [vmem:[#allocation3 + $0x28] sm:$0xff] %v317
      %334 = vst [vmem:[#allocation3 + $0x30] sm:$0xff] %v318
      %335 = vst [vmem:[#allocation3 + $0x38] sm:$0xff] %v319
      %336 = vst [vmem:[#allocation3 + $0x40] sm:$0xff] %v320
      %337 = vst [vmem:[#allocation3 + $0x48] sm:$0xff] %v321
      %338 = vst [vmem:[#allocation3 + $0x50] sm:$0xff] %v322
      %339 = vst [vmem:[#allocation3 + $0x58] sm:$0xff] %v323
      %340 = vst [vmem:[#allocation3 + $0x60] sm:$0xff] %v324
      %341 = vst [vmem:[#allocation3 + $0x68] sm:$0xff] %v325
      %342 = vst [vmem:[#allocation3 + $0x70] sm:$0xff] %v326
      %343 = vst [vmem:[#allocation3 + $0x78] sm:$0xff] %v327
    $region21: #{tpu_custom_call.1} parent=1 // pred_fallthru
      _
    // Predicated region
    $region22: #{tpu_custom_call.1} parent=1 // pred_check
      _
    $region23: #{tpu_custom_call.1} parent=1 // pred_check_branch
      %345 = sbr.rel (0) target = $region25
    $region24: #{tpu_custom_call.1} parent=1 // pred_region
      %s347 = ssub.s32 2048, 2048
      %348 = vsyncadd [#allocation4], %s347
      %s349 = sshll.u32 [#allocation3], 4
      %s350 = int_to_ptr.vmem [resolvable:$true] %s349
      %355 = dma.vmem_to_hbm [thread:$0]  %s350, 2048, %s3, [#allocation4], 128, 128, 8
    $region25: #{tpu_custom_call.1} parent=1 // pred_fallthru
      _
    // Predicated region
    $region26: #{tpu_custom_call.1} parent=1 // pred_check
      _
    $region27: #{tpu_custom_call.1} parent=1 // pred_check_branch
      %357 = sbr.rel (0) target = $region29
    $region28: #{tpu_custom_call.1} parent=1 // pred_region
      %358 = dma.done [#allocation4], 2048
    $region29: #{tpu_custom_call.1} parent=1 // pred_fallthru
      _
    %359 = vsyncpa [#allocation4], 1

</llo_original>
